<compile_context>
chip_gen: v5e
topology: v5e:2x2
jax: 0.10.0
libtpu: 0.0.40
codegen_flags: <defaults>
</compile_context>

<pallas_src>
import functools

import jax
import jax.numpy as jnp
from jax.experimental import pallas as pl
from jax.experimental.pallas import tpu as pltpu


def _readout_kernel(x_in_ref, x_out_ref, ids_ref,
                    wg_in_ref, w2_ref, b2_ref,
                    node_out_ref, graph_out_ref,
                    *, n_valid, tiles_per_chunk, num_classes, compute_dtype):
    c = pl.program_id(0)           # chunk (megacore) axis — "parallel"
    t = pl.program_id(1)           # node-tile axis — "arbitrary" (graph acc)
    tile_n = x_in_ref.shape[0]
    C = num_classes

    x_in = x_in_ref[...].astype(compute_dtype)      # [tile_n, H] bf16
    x_out = x_out_ref[...].astype(compute_dtype)    # [tile_n, H] bf16

    # Fused x_out matmul: W2 = [wg_out | wt] (bf16), b2 = [bg | bt] (f32).
    xo2 = (jnp.dot(x_out, w2_ref[...], preferred_element_type=jnp.float32)
           + b2_ref[...])                            # [tile_n, 2C] f32
    gate_logits = (jnp.dot(x_in, wg_in_ref[...],
                           preferred_element_type=jnp.float32)
                   + xo2[:, :C])                     # x_in@Wg_in + x_out@Wg_out + bg
    gating = jax.nn.sigmoid(gate_logits)             # [tile_n, C]
    nodewise = gating * xo2[:, C:]                   # gate * (x_out@Wt + bt)

    # Ragged-tail mask: rows >= N of the last tile read unspecified HBM
    # padding; zero them so neither the graph sum nor the (masked) nodewise
    # writeback ever sees garbage/NaN.
    row0 = (c * tiles_per_chunk + t) * tile_n
    rows = row0 + jax.lax.broadcasted_iota(jnp.int32, (tile_n, 1), 0)
    nodewise = jnp.where(rows < n_valid, nodewise, 0.0)

    node_out_ref[...] = nodewise.astype(node_out_ref.dtype)

    # Lane-dense segment sum: one-hot [G, tile_n] (tile_n on lanes), bf16 MXU
    # matmul with f32 accumulation. Out-of-range / garbage ids only ever
    # multiply rows that were just zeroed, so they contribute nothing.
    G = graph_out_ref.shape[1]
    ids = ids_ref[...]                                             # [1, tile_n] i32
    gidx = jax.lax.broadcasted_iota(jnp.int32, (G, tile_n), 0)     # [G, tile_n]
    onehot = (gidx == ids).astype(compute_dtype)                   # exact 0/1
    partial = jnp.dot(onehot, nodewise.astype(compute_dtype),
                      preferred_element_type=jnp.float32)          # [G, C] f32

    @pl.when(t == 0)
    def _():
        graph_out_ref[...] = jnp.zeros_like(graph_out_ref)

    graph_out_ref[...] += partial[None, :, :]


def readout_forward(raw_node_in, raw_node_out, params, graph_nodes_list,
                    num_graphs, *, tile_n=512, num_chunks=1,
                    compute_dtype=jnp.bfloat16):
    """Pallas wrapper. Returns (nodewise_readout [N, C], graph_readout [G, C]).

    tile_n: node rows per grid step (multiple of 128). The kernel is HBM-bound,
      so use the biggest tile that fits VMEM on *all* generations — do NOT
      shrink it on v7x (double-buffered footprint is a few MiB vs 64 MiB VMEM).
    num_chunks: leading "parallel" grid axis. Keep 1 on single-TensorCore chips
      (v5e/v6e); set 2 on megacore parts (v7x) after confirming in xprof that
      both TensorCores are busy (otherwise it is pure overhead there too).
    """
    N, H = raw_node_in.shape
    C = params["wt"].shape[1]
    G = int(num_graphs)
    assert tile_n % 128 == 0, "tile_n must be a multiple of 128"
    assert num_chunks >= 1

    tiles_per_chunk = max(1, pl.cdiv(N, tile_n * num_chunks))
    n_cover = num_chunks * tiles_per_chunk * tile_n

    ids = graph_nodes_list.astype(jnp.int32)

    if num_chunks > 1:
        # Megacore path: pad so no tile is ever *fully* out of bounds (fully
        # OOB blocks are unsafe; partially OOB blocks are handled in-kernel).
        pad = n_cover - N
        x_in = jnp.pad(raw_node_in, ((0, pad), (0, 0)))
        x_out = jnp.pad(raw_node_out, ((0, pad), (0, 0)))
        ids = jnp.pad(ids, (0, pad), constant_values=G)
        n_rows_out = n_cover
    else:
        # Default path: no padding of the big [N, H] inputs — the ragged tail
        # tile is masked in-kernel and the partial output writeback is masked
        # by Pallas.
        x_in, x_out = raw_node_in, raw_node_out
        n_rows_out = N

    ids_row = ids.reshape(1, -1)                      # lane-major ids

    # One-time bf16 cast of the (small) weights in the wrapper; fuse the two
    # x_out linears: W2 = [wg_out | wt] in [H, 2C], b2 = [bg | bt] in f32.
    wg_in = params["wg"][:H, :].astype(compute_dtype)                       # [H, C]
    w2 = jnp.concatenate([params["wg"][H:, :], params["wt"]],
                         axis=1).astype(compute_dtype)                      # [H, 2C]
    b2 = jnp.concatenate([params["bg"], params["bt"]]
                         ).reshape(1, 2 * C).astype(jnp.float32)            # [1, 2C]

    def node_map(c, t):
        return (c * tiles_per_chunk + t, 0)

    def ids_map(c, t):
        return (0, c * tiles_per_chunk + t)

    def full_map(c, t):
        return (0, 0)

    grid = (num_chunks, tiles_per_chunk)

    flops = 2 * n_cover * C * (3 * H + G)
    bytes_accessed = (4 * (2 * N * H + N * C + N)        # x_in/x_out/nodewise/ids
                      + 2 * (3 * H * C) + 4 * 2 * C      # bf16 weights + f32 bias
                      + 4 * num_chunks * G * C)          # graph partials

    nodewise, graph_partials = pl.pallas_call(
        functools.partial(_readout_kernel,
                          n_valid=N,
                          tiles_per_chunk=tiles_per_chunk,
                          num_classes=C,
                          compute_dtype=compute_dtype),
        grid=grid,
        in_specs=[
            pl.BlockSpec((tile_n, H), node_map),     # x_in  (streamed)
            pl.BlockSpec((tile_n, H), node_map),     # x_out (streamed)
            pl.BlockSpec((1, tile_n), ids_map),      # ids   (lane-major)
            pl.BlockSpec((H, C), full_map),          # wg_in (VMEM-resident, bf16)
            pl.BlockSpec((H, 2 * C), full_map),      # [wg_out | wt]  (resident, bf16)
            pl.BlockSpec((1, 2 * C), full_map),      # [bg | bt]      (resident, f32)
        ],
        out_specs=(
            pl.BlockSpec((tile_n, C), node_map),              # nodewise
            pl.BlockSpec((1, G, C), lambda c, t: (c, 0, 0)),  # per-chunk graph acc
        ),
        out_shape=(
            jax.ShapeDtypeStruct((n_rows_out, C), jnp.float32),
            jax.ShapeDtypeStruct((num_chunks, G, C), jnp.float32),
        ),
        compiler_params=pltpu.CompilerParams(
            dimension_semantics=("parallel", "arbitrary")),
        cost_estimate=pl.CostEstimate(
            flops=flops,
            transcendentals=n_cover * C,
            bytes_accessed=bytes_accessed),
    )(x_in, x_out, ids_row, wg_in, w2, b2)

    if n_rows_out != N:
        nodewise = nodewise[:N]
    graph = graph_partials[0] if num_chunks == 1 else jnp.sum(graph_partials, axis=0)
    return nodewise, graph


def init_params(key, hidden_size, num_classes):
    k1, k2, k3, k4 = jax.random.split(key, 4)
    return {
        # regression_gate: Linear(2H -> C), stored as [2H, C]
        "wg": jax.random.normal(k1, (2 * hidden_size, num_classes), jnp.float32) * 0.1,
        "bg": jax.random.normal(k2, (num_classes,), jnp.float32) * 0.1,
        # regression_transform: Linear(H -> C), stored as [H, C]
        "wt": jax.random.normal(k3, (hidden_size, num_classes), jnp.float32) * 0.1,
        "bt": jax.random.normal(k4, (num_classes,), jnp.float32) * 0.1,
    }


def reference_forward(raw_node_in, raw_node_out, params, graph_nodes_list, num_graphs):
    gate_input = jnp.concatenate((raw_node_in, raw_node_out), axis=-1)
    gating = jax.nn.sigmoid(gate_input @ params["wg"] + params["bg"])
    nodewise = gating * (raw_node_out @ params["wt"] + params["bt"])
    graph = jnp.zeros((num_graphs, params["wt"].shape[1]), jnp.float32)
    graph = graph.at[graph_nodes_list].add(nodewise)
    return nodewise, graph


if __name__ == "__main__":
    N = 300         # nodes (non-multiple of tile_n -> exercises ragged-tail mask)
    H = 32          # hidden_size
    C = 8           # num_classes
    G = 5           # num_graphs

    key = jax.random.PRNGKey(0)
    kp, k1, k2, k3 = jax.random.split(key, 4)
    params = init_params(kp, H, C)

    raw_node_in = jax.random.normal(k1, (N, H), jnp.float32)
    raw_node_out = jax.random.normal(k2, (N, H), jnp.float32)
    graph_nodes_list = jax.random.randint(k3, (N,), 0, G, jnp.int32)

    nodewise, graph = readout_forward(raw_node_in, raw_node_out, params,
                                      graph_nodes_list, G,
                                      tile_n=128, num_chunks=1)
    jax.block_until_ready((nodewise, graph))

    ref_node, ref_graph = reference_forward(raw_node_in, raw_node_out, params,
                                            graph_nodes_list, G)
    assert nodewise.shape == (N, C) and graph.shape == (G, C)
    # bf16 matmul operands (f32 accumulation) -> loosened tolerance vs f32 ref.
    assert jnp.allclose(nodewise, ref_node, atol=5e-2, rtol=5e-2), (
        float(jnp.max(jnp.abs(nodewise - ref_node))))
    assert jnp.allclose(graph, ref_graph, atol=1e-1, rtol=5e-2), (
        float(jnp.max(jnp.abs(graph - ref_graph))))

    print("KERNEL_OK")
</pallas_src>

<mosaic_0001>
module attributes {stable_mosaic.version = 11 : i64} {
  func.func @_readout_kernel(%arg0: i32, %arg1: i32, %arg2: memref<128x32xf32, #tpu.memory_space<vmem>>, %arg3: memref<128x32xf32, #tpu.memory_space<vmem>>, %arg4: memref<1x128xi32, #tpu.memory_space<vmem>>, %arg5: memref<32x8xbf16, #tpu.memory_space<vmem>>, %arg6: memref<32x16xbf16, #tpu.memory_space<vmem>>, %arg7: memref<1x16xf32, #tpu.memory_space<vmem>>, %arg8: memref<128x8xf32, #tpu.memory_space<vmem>>, %arg9: memref<1x5x8xf32, #tpu.memory_space<vmem>>) attributes {dimension_semantics = [#tpu.dimension_semantics<parallel>, #tpu.dimension_semantics<arbitrary>], iteration_bounds = array<i64: 1, 3>, scalar_prefetch = 0 : i64, scratch_operands = 0 : i64, tpu.core_type = #tpu.core_type<tc>, window_params = [{transform_indices = @transform_0, window_bounds = array<i64: 128, 32>}, {transform_indices = @transform_1, window_bounds = array<i64: 128, 32>}, {transform_indices = @transform_2, window_bounds = array<i64: 1, 128>}, {pipeline_mode = #tpu.pipeline_mode<synchronous>, transform_indices = @transform_3, window_bounds = array<i64: 32, 8>}, {pipeline_mode = #tpu.pipeline_mode<synchronous>, transform_indices = @transform_4, window_bounds = array<i64: 32, 16>}, {pipeline_mode = #tpu.pipeline_mode<synchronous>, transform_indices = @transform_5, window_bounds = array<i64: 1, 16>}, {transform_indices = @transform_6, window_bounds = array<i64: 128, 8>}, {transform_indices = @transform_7, window_bounds = array<i64: 1, 5, 8>}]} {
    %c0 = arith.constant 0 : index
    %c0_0 = arith.constant 0 : index
    %0 = vector.load %arg2[%c0, %c0_0] : memref<128x32xf32, #tpu.memory_space<vmem>>, vector<128x32xf32>
    %1 = arith.truncf %0 : vector<128x32xf32> to vector<128x32xbf16>
    %c0_1 = arith.constant 0 : index
    %c0_2 = arith.constant 0 : index
    %2 = vector.load %arg3[%c0_1, %c0_2] : memref<128x32xf32, #tpu.memory_space<vmem>>, vector<128x32xf32>
    %3 = arith.truncf %2 : vector<128x32xf32> to vector<128x32xbf16>
    %c0_3 = arith.constant 0 : index
    %c0_4 = arith.constant 0 : index
    %4 = vector.load %arg6[%c0_3, %c0_4] : memref<32x16xbf16, #tpu.memory_space<vmem>>, vector<32x16xbf16>
    %cst = arith.constant dense<0.000000e+00> : vector<128x16xf32>
    %5 = tpu.matmul %3, %4, %cst {dimension_numbers = #tpu.dot_dimension_numbers<[1], [0], [0], [1], [0, 0, 1, 1], [], []>} : vector<128x32xbf16>, vector<32x16xbf16>, vector<128x16xf32> -> vector<128x16xf32>
    %c0_5 = arith.constant 0 : index
    %c0_6 = arith.constant 0 : index
    %6 = vector.load %arg7[%c0_5, %c0_6] : memref<1x16xf32, #tpu.memory_space<vmem>>, vector<1x16xf32>
    %7 = vector.broadcast %6 : vector<1x16xf32> to vector<128x16xf32>
    %8 = arith.addf %5, %7 : vector<128x16xf32>
    %c0_7 = arith.constant 0 : index
    %c0_8 = arith.constant 0 : index
    %9 = vector.load %arg5[%c0_7, %c0_8] : memref<32x8xbf16, #tpu.memory_space<vmem>>, vector<32x8xbf16>
    %cst_9 = arith.constant dense<0.000000e+00> : vector<128x8xf32>
    %10 = tpu.matmul %1, %9, %cst_9 {dimension_numbers = #tpu.dot_dimension_numbers<[1], [0], [0], [1], [0, 0, 1, 1], [], []>} : vector<128x32xbf16>, vector<32x8xbf16>, vector<128x8xf32> -> vector<128x8xf32>
    %11 = vector.extract_strided_slice %8 {offsets = [0, 0], sizes = [128, 8], strides = [1, 1]} : vector<128x16xf32> to vector<128x8xf32>
    %12 = arith.addf %10, %11 : vector<128x8xf32>
    %13 = arith.negf %12 : vector<128x8xf32>
    %14 = math.exp %13 : vector<128x8xf32>
    %cst_10 = arith.constant 1.000000e+00 : f32
    %15 = vector.broadcast %cst_10 : f32 to vector<128x8xf32>
    %16 = arith.addf %15, %14 : vector<128x8xf32>
    %17 = arith.divf %15, %16 : vector<128x8xf32>
    %18 = vector.extract_strided_slice %8 {offsets = [0, 8], sizes = [128, 8], strides = [1, 1]} : vector<128x16xf32> to vector<128x8xf32>
    %19 = arith.mulf %17, %18 : vector<128x8xf32>
    %c3_i32 = arith.constant 3 : i32
    %20 = arith.muli %arg0, %c3_i32 : i32
    %21 = arith.addi %20, %arg1 : i32
    %c128_i32 = arith.constant 128 : i32
    %22 = arith.muli %21, %c128_i32 : i32
    %23 = tpu.iota {dimensions = array<i32: 0>} : vector<128x1xi32>
    %24 = vector.broadcast %22 : i32 to vector<128x1xi32>
    %25 = arith.addi %24, %23 : vector<128x1xi32>
    %c300_i32 = arith.constant 300 : i32
    %26 = vector.broadcast %c300_i32 : i32 to vector<128x1xi32>
    %27 = arith.cmpi slt, %25, %26 : vector<128x1xi32>
    %cst_11 = arith.constant 0.000000e+00 : f32
    %28 = vector.shape_cast %27 : vector<128x1xi1> to vector<128x1xi1>
    %29 = vector.broadcast %28 : vector<128x1xi1> to vector<128x8xi1>
    %30 = vector.broadcast %cst_11 : f32 to vector<128x8xf32>
    %31 = arith.select %29, %19, %30 : vector<128x8xi1>, vector<128x8xf32>
    %c0_12 = arith.constant 0 : index
    %c0_13 = arith.constant 0 : index
    %32 = vector.load %arg8[%c0_12, %c0_13] : memref<128x8xf32, #tpu.memory_space<vmem>>, vector<128x8xf32>
    tpu.vector_store %arg8[%c0_12, %c0_13], %31 {strides = array<i32>} : memref<128x8xf32, #tpu.memory_space<vmem>>, vector<128x8xf32>,
    %c0_14 = arith.constant 0 : index
    %c0_15 = arith.constant 0 : index
    %33 = vector.load %arg4[%c0_14, %c0_15] : memref<1x128xi32, #tpu.memory_space<vmem>>, vector<1x128xi32>
    %34 = tpu.iota {dimensions = array<i32: 0>} : vector<5x128xi32>
    %35 = vector.broadcast %33 : vector<1x128xi32> to vector<5x128xi32>
    %36 = arith.cmpi eq, %34, %35 : vector<5x128xi32>
    %37 = arith.extui %36 : vector<5x128xi1> to vector<5x128xi32>
    %38 = arith.sitofp %37 : vector<5x128xi32> to vector<5x128xf32>
    %39 = arith.truncf %38 : vector<5x128xf32> to vector<5x128xbf16>
    %40 = arith.truncf %31 : vector<128x8xf32> to vector<128x8xbf16>
    %cst_16 = arith.constant dense<0.000000e+00> : vector<5x8xf32>
    %41 = tpu.matmul %39, %40, %cst_16 {dimension_numbers = #tpu.dot_dimension_numbers<[1], [0], [0], [1], [0, 0, 1, 1], [], []>} : vector<5x128xbf16>, vector<128x8xbf16>, vector<5x8xf32> -> vector<5x8xf32>
    %c0_i32 = arith.constant 0 : i32
    %42 = arith.cmpi eq, %arg1, %c0_i32 : i32
    %43 = arith.extui %42 : i1 to i32
    %c0_i32_17 = arith.constant 0 : i32
    %44 = arith.cmpi ne, %43, %c0_i32_17 : i32
    scf.if %44 {
      %cst_24 = arith.constant 0.000000e+00 : f32
      %49 = vector.broadcast %cst_24 : f32 to vector<1x5x8xf32>
      %c0_25 = arith.constant 0 : index
      %c0_26 = arith.constant 0 : index
      %c0_27 = arith.constant 0 : index
      %50 = vector.load %arg9[%c0_25, %c0_26, %c0_27] : memref<1x5x8xf32, #tpu.memory_space<vmem>>, vector<1x5x8xf32>
      tpu.vector_store %arg9[%c0_25, %c0_26, %c0_27], %49 {strides = array<i32>} : memref<1x5x8xf32, #tpu.memory_space<vmem>>, vector<1x5x8xf32>,
    } else {
    }
    %c0_18 = arith.constant 0 : index
    %c0_19 = arith.constant 0 : index
    %c0_20 = arith.constant 0 : index
    %45 = vector.load %arg9[%c0_18, %c0_19, %c0_20] : memref<1x5x8xf32, #tpu.memory_space<vmem>>, vector<1x5x8xf32>
    %46 = vector.shape_cast %41 : vector<5x8xf32> to vector<1x5x8xf32>
    %47 = arith.addf %45, %46 : vector<1x5x8xf32>
    %c0_21 = arith.constant 0 : index
    %c0_22 = arith.constant 0 : index
    %c0_23 = arith.constant 0 : index
    %48 = vector.load %arg9[%c0_21, %c0_22, %c0_23] : memref<1x5x8xf32, #tpu.memory_space<vmem>>, vector<1x5x8xf32>
    tpu.vector_store %arg9[%c0_21, %c0_22, %c0_23], %47 {strides = array<i32>} : memref<1x5x8xf32, #tpu.memory_space<vmem>>, vector<1x5x8xf32>,
    return
  }
  func.func @transform_0(%arg0: i32, %arg1: i32) -> (i32, i32) {
    %c3_i32 = arith.constant 3 : i32
    %0 = arith.muli %arg0, %c3_i32 : i32
    %1 = arith.addi %0, %arg1 : i32
    %c0_i32 = arith.constant 0 : i32
    %c0_i32_0 = arith.constant 0 : i32
    return %1, %c0_i32 : i32, i32
  }
  func.func @transform_1(%arg0: i32, %arg1: i32) -> (i32, i32) {
    %c3_i32 = arith.constant 3 : i32
    %0 = arith.muli %arg0, %c3_i32 : i32
    %1 = arith.addi %0, %arg1 : i32
    %c0_i32 = arith.constant 0 : i32
    %c0_i32_0 = arith.constant 0 : i32
    return %1, %c0_i32 : i32, i32
  }
  func.func @transform_2(%arg0: i32, %arg1: i32) -> (i32, i32) {
    %c3_i32 = arith.constant 3 : i32
    %0 = arith.muli %arg0, %c3_i32 : i32
    %1 = arith.addi %0, %arg1 : i32
    %c0_i32 = arith.constant 0 : i32
    %c0_i32_0 = arith.constant 0 : i32
    return %c0_i32, %1 : i32, i32
  }
  func.func @transform_3(%arg0: i32, %arg1: i32) -> (i32, i32) {
    %c0_i32 = arith.constant 0 : i32
    %c0_i32_0 = arith.constant 0 : i32
    %c0_i32_1 = arith.constant 0 : i32
    return %c0_i32, %c0_i32_0 : i32, i32
  }
  func.func @transform_4(%arg0: i32, %arg1: i32) -> (i32, i32) {
    %c0_i32 = arith.constant 0 : i32
    %c0_i32_0 = arith.constant 0 : i32
    %c0_i32_1 = arith.constant 0 : i32
    return %c0_i32, %c0_i32_0 : i32, i32
  }
  func.func @transform_5(%arg0: i32, %arg1: i32) -> (i32, i32) {
    %c0_i32 = arith.constant 0 : i32
    %c0_i32_0 = arith.constant 0 : i32
    %c0_i32_1 = arith.constant 0 : i32
    return %c0_i32, %c0_i32_0 : i32, i32
  }
  func.func @transform_6(%arg0: i32, %arg1: i32) -> (i32, i32) {
    %c3_i32 = arith.constant 3 : i32
    %0 = arith.muli %arg0, %c3_i32 : i32
    %1 = arith.addi %0, %arg1 : i32
    %c0_i32 = arith.constant 0 : i32
    %c0_i32_0 = arith.constant 0 : i32
    return %1, %c0_i32 : i32, i32
  }
  func.func @transform_7(%arg0: i32, %arg1: i32) -> (i32, i32, i32) {
    %c0_i32 = arith.constant 0 : i32
    %c0_i32_0 = arith.constant 0 : i32
    %c0_i32_1 = arith.constant 0 : i32
    return %arg0, %c0_i32, %c0_i32_0 : i32, i32, i32
  }
}

</mosaic_0001>

<llo_original>
// kernel: tpu_custom_call.1
$region0: #{tpu_custom_call.1}
  #allocation0 [shape = 'u32[]', space=smem, size = 0x4, offset = 0x4, fixed_abs, tag = 'smem constant byte address 0x4 - core index']
  #allocation1 [shape = 'u32[72,128]{1,0:T(1,128)}', space=vmem, size = 0x9000, scoped, tag = 'internal scratch']
  %s0 = inlined_call_operand.vmem [shape: f32[300,32], index: 0, kind: input, shape index: {}]
  %s1 = inlined_call_operand.vmem [shape: f32[300,32], index: 1, kind: input, shape index: {}]
  %s2 = inlined_call_operand.vmem [shape: s32[1,300], index: 2, kind: input, shape index: {}]
  %s3 = inlined_call_operand.vmem [shape: bf16[32,8], index: 3, kind: input, shape index: {}]
  %s4 = inlined_call_operand.vmem [shape: bf16[32,16], index: 4, kind: input, shape index: {}]
  %s5 = inlined_call_operand.vmem [shape: f32[1,16], index: 5, kind: input, shape index: {}]
  %s6 = inlined_call_operand.vmem [shape: f32[300,8], index: 6, kind: output, shape index: {0}]
  %s7 = inlined_call_operand.vmem [shape: f32[1,5,8], index: 7, kind: output, shape index: {1}]
  %8 = xla_tuple %s6, %s7
  %s9 = sld [smem:[#allocation0]]
  $region117: #{tpu_custom_call.1} parent=0
    _
  %s11 = ssub.s32 1, %s9
  %s12 = scalar_select 0, %s11, %s9
  $region1: #{tpu_custom_call.1} parent=0
    #allocation2 [shape = 'u8[131072]{0}', space=vmem, size = 0x20000, scoped, tag = 'output window, operand 0']
    loop: start=0, step=1, limit=5
    $region2: #{tpu_custom_call.1} parent=1 // loop_pre_header
      _
    $region3: #{tpu_custom_call.1} parent=1 // loop_header
      %s14 = sphi 0, %s18
      %p15 = scmp.ge.s32.totalorder %s14, 5
      %s21 = sphi 0, %s33
      %s22 = sphi 0, %s29
      %s23 = sphi 0, %s21
      %s24 = sphi 0, %s22
      %s25 = sphi 0, %s23
      %s26 = sphi 0, %s24
      %s40 = sphi 0, %s42
      %s43 = sphi 0, %s40
      %s44 = sphi 0, %s43
      %s60 = sphi 0, %s44
      %s70 = sphi 0, %s72
      %s73 = sphi 0, %s70
      %s74 = sphi 0, %s73
      %s90 = sphi 0, %s74
      %s100 = sphi 0, %s102
      %s103 = sphi 0, %s100
      %s104 = sphi 0, %s103
      %s120 = sphi 0, %s104
      %s124 = sphi 0, %s124
      %s126 = sphi 0, %s124
      %s127 = sphi 0, %s126
      %s141 = sphi 0, %s127
      %s145 = sphi 0, %s145
      %s147 = sphi 0, %s145
      %s148 = sphi 0, %s147
      %s162 = sphi 0, %s148
      %s166 = sphi 0, %s166
      %s168 = sphi 0, %s166
      %s169 = sphi 0, %s168
      %s183 = sphi 0, %s169
      %s193 = sphi 0, %s195
      %s196 = sphi 0, %s193
      %s197 = sphi 0, %s196
      %s213 = sphi 0, %s197
      %s219 = sphi 0, %s221
      %s222 = sphi 0, %s219
      %s223 = sphi 0, %s222
      %s239 = sphi 0, %s223
    $region4: #{tpu_custom_call.1} parent=1 // loop_header_branch
      %17 = sbr.rel (%p15) target = $region8
    $region5: #{tpu_custom_call.1} parent=1 // loop_body
      %s19 = ssub.s32 %s14, 1
      %s20 = ssub.s32 %s14, 2
      %s27 = sadd.s32 1, %s22
      %p28 = scmp.ge.s32.totalorder %s27, 3
      %s29 = scalar_select %p28, 0, %s27
      %s30 = sadd.s32 1, %s21
      %s31 = scalar_select %p28, %s30, %s21
      %p32 = scmp.ge.s32.totalorder %s31, 1
      %s33 = scalar_select %p32, 0, %s31
      %s34 = smul.u32 %s21, 3
      %s35 = sadd.s32 %s34, %s22
      %s36 = smul.u32 %s33, 3
      %s37 = sadd.s32 %s36, %s29
      %s38 = ssub.s32 %s35, %s37
      %p39 = scmp.eq.s32.totalorder %s38, 0
      %s41 = sadd.s32 %s40, 1
      %s42 = scalar_select %p39, %s40, %s41
      %p45 = pneg %p39
      %p46 = scmp.eq.s32.totalorder %s14, 2
      %p47 = por %p45, %p46
      %p48 = scmp.ne.s32.totalorder %s40, %s43
      %p49 = scmp.eq.s32.totalorder %s14, 0
      %p50 = por %p48, %p49
      %p51 = scmp.ne.s32.totalorder %s40, %s43
      %p52 = scmp.eq.s32.totalorder %s19, 2
      %p53 = por %p51, %p52
      %p54 = scmp.ne.s32.totalorder %s43, %s44
      %p55 = scmp.eq.s32.totalorder %s19, 0
      %p56 = por %p54, %p55
      %p57 = scmp.ne.s32.totalorder %s43, %s44
      %p58 = scmp.eq.s32.totalorder %s20, 2
      %p59 = por %p57, %p58
      %p61 = scmp.ne.s32.totalorder %s44, %s60
      %p62 = scmp.eq.s32.totalorder %s20, 0
      %p63 = por %p61, %p62
      %s64 = smul.u32 %s21, 3
      %s65 = sadd.s32 %s64, %s22
      %s66 = smul.u32 %s33, 3
      %s67 = sadd.s32 %s66, %s29
      %s68 = ssub.s32 %s65, %s67
      %p69 = scmp.eq.s32.totalorder %s68, 0
      %s71 = sadd.s32 %s70, 1
      %s72 = scalar_select %p69, %s70, %s71
      %p75 = pneg %p69
      %p76 = scmp.eq.s32.totalorder %s14, 2
      %p77 = por %p75, %p76
      %p78 = scmp.ne.s32.totalorder %s70, %s73
      %p79 = scmp.eq.s32.totalorder %s14, 0
      %p80 = por %p78, %p79
      %p81 = scmp.ne.s32.totalorder %s70, %s73
      %p82 = scmp.eq.s32.totalorder %s19, 2
      %p83 = por %p81, %p82
      %p84 = scmp.ne.s32.totalorder %s73, %s74
      %p85 = scmp.eq.s32.totalorder %s19, 0
      %p86 = por %p84, %p85
      %p87 = scmp.ne.s32.totalorder %s73, %s74
      %p88 = scmp.eq.s32.totalorder %s20, 2
      %p89 = por %p87, %p88
      %p91 = scmp.ne.s32.totalorder %s74, %s90
      %p92 = scmp.eq.s32.totalorder %s20, 0
      %p93 = por %p91, %p92
      %s94 = smul.u32 %s21, 3
      %s95 = sadd.s32 %s94, %s22
      %s96 = smul.u32 %s33, 3
      %s97 = sadd.s32 %s96, %s29
      %s98 = ssub.s32 %s95, %s97
      %p99 = scmp.eq.s32.totalorder %s98, 0
      %s101 = sadd.s32 %s100, 1
      %s102 = scalar_select %p99, %s100, %s101
      %p105 = pneg %p99
      %p106 = scmp.eq.s32.totalorder %s14, 2
      %p107 = por %p105, %p106
      %p108 = scmp.ne.s32.totalorder %s100, %s103
      %p109 = scmp.eq.s32.totalorder %s14, 0
      %p110 = por %p108, %p109
      %p111 = scmp.ne.s32.totalorder %s100, %s103
      %p112 = scmp.eq.s32.totalorder %s19, 2
      %p113 = por %p111, %p112
      %p114 = scmp.ne.s32.totalorder %s103, %s104
      %p115 = scmp.eq.s32.totalorder %s19, 0
      %p116 = por %p114, %p115
      %p117 = scmp.ne.s32.totalorder %s103, %s104
      %p118 = scmp.eq.s32.totalorder %s20, 2
      %p119 = por %p117, %p118
      %p121 = scmp.ne.s32.totalorder %s104, %s120
      %p122 = scmp.eq.s32.totalorder %s20, 0
      %p123 = por %p121, %p122
      %s125 = sadd.s32 %s124, 1
      %p128 = scmp.eq.s32.totalorder %s14, 2
      %p129 = scmp.ne.s32.totalorder %s124, %s126
      %p130 = scmp.eq.s32.totalorder %s14, 0
      %p131 = por %p129, %p130
      %p132 = scmp.ne.s32.totalorder %s124, %s126
      %p133 = scmp.eq.s32.totalorder %s19, 2
      %p134 = por %p132, %p133
      %p135 = scmp.ne.s32.totalorder %s126, %s127
      %p136 = scmp.eq.s32.totalorder %s19, 0
      %p137 = por %p135, %p136
      %p138 = scmp.ne.s32.totalorder %s126, %s127
      %p139 = scmp.eq.s32.totalorder %s20, 2
      %p140 = por %p138, %p139
      %p142 = scmp.ne.s32.totalorder %s127, %s141
      %p143 = scmp.eq.s32.totalorder %s20, 0
      %p144 = por %p142, %p143
      %s146 = sadd.s32 %s145, 1
      %p149 = scmp.eq.s32.totalorder %s14, 2
      %p150 = scmp.ne.s32.totalorder %s145, %s147
      %p151 = scmp.eq.s32.totalorder %s14, 0
      %p152 = por %p150, %p151
      %p153 = scmp.ne.s32.totalorder %s145, %s147
      %p154 = scmp.eq.s32.totalorder %s19, 2
      %p155 = por %p153, %p154
      %p156 = scmp.ne.s32.totalorder %s147, %s148
      %p157 = scmp.eq.s32.totalorder %s19, 0
      %p158 = por %p156, %p157
      %p159 = scmp.ne.s32.totalorder %s147, %s148
      %p160 = scmp.eq.s32.totalorder %s20, 2
      %p161 = por %p159, %p160
      %p163 = scmp.ne.s32.totalorder %s148, %s162
      %p164 = scmp.eq.s32.totalorder %s20, 0
      %p165 = por %p163, %p164
      %s167 = sadd.s32 %s166, 1
      %p170 = scmp.eq.s32.totalorder %s14, 2
      %p171 = scmp.ne.s32.totalorder %s166, %s168
      %p172 = scmp.eq.s32.totalorder %s14, 0
      %p173 = por %p171, %p172
      %p174 = scmp.ne.s32.totalorder %s166, %s168
      %p175 = scmp.eq.s32.totalorder %s19, 2
      %p176 = por %p174, %p175
      %p177 = scmp.ne.s32.totalorder %s168, %s169
      %p178 = scmp.eq.s32.totalorder %s19, 0
      %p179 = por %p177, %p178
      %p180 = scmp.ne.s32.totalorder %s168, %s169
      %p181 = scmp.eq.s32.totalorder %s20, 2
      %p182 = por %p180, %p181
      %p184 = scmp.ne.s32.totalorder %s169, %s183
      %p185 = scmp.eq.s32.totalorder %s20, 0
      %p186 = por %p184, %p185
      %s187 = smul.u32 %s21, 3
      %s188 = sadd.s32 %s187, %s22
      %s189 = smul.u32 %s33, 3
      %s190 = sadd.s32 %s189, %s29
      %s191 = ssub.s32 %s188, %s190
      %p192 = scmp.eq.s32.totalorder %s191, 0
      %s194 = sadd.s32 %s193, 1
      %s195 = scalar_select %p192, %s193, %s194
      %p198 = pneg %p192
      %p199 = scmp.eq.s32.totalorder %s14, 2
      %p200 = por %p198, %p199
      %p201 = scmp.ne.s32.totalorder %s193, %s196
      %p202 = scmp.eq.s32.totalorder %s14, 0
      %p203 = por %p201, %p202
      %p204 = scmp.ne.s32.totalorder %s193, %s196
      %p205 = scmp.eq.s32.totalorder %s19, 2
      %p206 = por %p204, %p205
      %p207 = scmp.ne.s32.totalorder %s196, %s197
      %p208 = scmp.eq.s32.totalorder %s19, 0
      %p209 = por %p207, %p208
      %p210 = scmp.ne.s32.totalorder %s196, %s197
      %p211 = scmp.eq.s32.totalorder %s20, 2
      %p212 = por %p210, %p211
      %p214 = scmp.ne.s32.totalorder %s197, %s213
      %p215 = scmp.eq.s32.totalorder %s20, 0
      %p216 = por %p214, %p215
      %s217 = ssub.s32 %s21, %s33
      %p218 = scmp.eq.s32.totalorder %s217, 0
      %s220 = sadd.s32 %s219, 1
      %s221 = scalar_select %p218, %s219, %s220
      %p224 = pneg %p218
      %p225 = scmp.eq.s32.totalorder %s14, 2
      %p226 = por %p224, %p225
      %p227 = scmp.ne.s32.totalorder %s219, %s222
      %p228 = scmp.eq.s32.totalorder %s14, 0
      %p229 = por %p227, %p228
      %p230 = scmp.ne.s32.totalorder %s219, %s222
      %p231 = scmp.eq.s32.totalorder %s19, 2
      %p232 = por %p230, %p231
      %p233 = scmp.ne.s32.totalorder %s222, %s223
      %p234 = scmp.eq.s32.totalorder %s19, 0
      %p235 = por %p233, %p234
      %p236 = scmp.ne.s32.totalorder %s222, %s223
      %p237 = scmp.eq.s32.totalorder %s20, 2
      %p238 = por %p236, %p237
      %p240 = scmp.ne.s32.totalorder %s223, %s239
      %p241 = scmp.eq.s32.totalorder %s20, 0
      %p242 = por %p240, %p241
      %p243 = scmp.le.s32.totalorder 1, %s14
      %p244 = scmp.lt.s32.totalorder %s14, 4
      %p245 = pnand %p243, %p244
      %p246 = pneg %p245
      // Predicated region
      $region9: #{tpu_custom_call.1} parent=5 // pred_check
        _
      $region10: #{tpu_custom_call.1} parent=5 // pred_check_branch
        %248 = sbr.rel (%p245) target = $region12
      $region11: #{tpu_custom_call.1} parent=5 // pred_region
        %s249 = ssub.s32 %s14, 1
        // Predicated region
        $region13: #{tpu_custom_call.1} parent=11 // pred_check
          %p250 = pneg %p137
        $region14: #{tpu_custom_call.1} parent=11 // pred_check_branch
          %252 = sbr.rel (%p250) target = $region16
        $region15: #{tpu_custom_call.1} parent=11 // pred_region
          _
        $region16: #{tpu_custom_call.1} parent=11 // pred_fallthru
          _
        // Predicated region
        $region17: #{tpu_custom_call.1} parent=11 // pred_check
          %p253 = pneg %p158
        $region18: #{tpu_custom_call.1} parent=11 // pred_check_branch
          %255 = sbr.rel (%p253) target = $region20
        $region19: #{tpu_custom_call.1} parent=11 // pred_region
          _
        $region20: #{tpu_custom_call.1} parent=11 // pred_fallthru
          _
        // Predicated region
        $region21: #{tpu_custom_call.1} parent=11 // pred_check
          %p256 = pneg %p179
        $region22: #{tpu_custom_call.1} parent=11 // pred_check_branch
          %258 = sbr.rel (%p256) target = $region24
        $region23: #{tpu_custom_call.1} parent=11 // pred_region
          _
        $region24: #{tpu_custom_call.1} parent=11 // pred_fallthru
          _
      $region12: #{tpu_custom_call.1} parent=5 // pred_fallthru
        _
      %p259 = scmp.lt.s32.totalorder %s14, 3
      // Predicated region
      $region25: #{tpu_custom_call.1} parent=5 // pred_check
        %p260 = pneg %p259
      $region26: #{tpu_custom_call.1} parent=5 // pred_check_branch
        %262 = sbr.rel (%p260) target = $region28
      $region27: #{tpu_custom_call.1} parent=5 // pred_region
        // Predicated region
        $region29: #{tpu_custom_call.1} parent=27 // pred_check
          %p263 = pneg %p50
        $region30: #{tpu_custom_call.1} parent=27 // pred_check_branch
          %265 = sbr.rel (%p263) target = $region32
        $region31: #{tpu_custom_call.1} parent=27 // pred_region
          %s266 = smul.u32 %s21, 3
          %s267 = sadd.s32 %s266, %s22
          %s268 = smul.u32 16, %s267
          %s269 = ssub.s32 38, %s268
          %p270 = scmp.lt.s32.totalorder %s269, 16
          %s271 = scalar_select %p270, %s269, 16
          %s272 = smul.u32 8, %s271
          %p273 = scmp.lt.s32.totalorder %s268, 37
          %s274 = scalar_select %p273, %s268, 37
          %s275 = smul.addr %s274, 8
          %s276 = scalar_lea.vmem %s0, %s275
          %s277 = smul.u32 %s21, 3
          %s278 = sadd.s32 %s277, %s22
          %s279 = smul.u32 16, %s278
          %s280 = ssub.s32 38, %s279
          %p281 = scmp.lt.s32.totalorder %s280, 16
          %s282 = scalar_select %p281, %s280, 16
          %s283 = smul.u32 8, %s282
        $region32: #{tpu_custom_call.1} parent=27 // pred_fallthru
          _
        // Predicated region
        $region33: #{tpu_custom_call.1} parent=27 // pred_check
          %p284 = pneg %p80
        $region34: #{tpu_custom_call.1} parent=27 // pred_check_branch
          %286 = sbr.rel (%p284) target = $region36
        $region35: #{tpu_custom_call.1} parent=27 // pred_region
          %s287 = smul.u32 %s21, 3
          %s288 = sadd.s32 %s287, %s22
          %s289 = smul.u32 16, %s288
          %s290 = ssub.s32 38, %s289
          %p291 = scmp.lt.s32.totalorder %s290, 16
          %s292 = scalar_select %p291, %s290, 16
          %s293 = smul.u32 8, %s292
          %p294 = scmp.lt.s32.totalorder %s289, 37
          %s295 = scalar_select %p294, %s289, 37
          %s296 = smul.addr %s295, 8
          %s297 = scalar_lea.vmem %s1, %s296
          %s298 = smul.u32 %s21, 3
          %s299 = sadd.s32 %s298, %s22
          %s300 = smul.u32 16, %s299
          %s301 = ssub.s32 38, %s300
          %p302 = scmp.lt.s32.totalorder %s301, 16
          %s303 = scalar_select %p302, %s301, 16
          %s304 = smul.u32 8, %s303
        $region36: #{tpu_custom_call.1} parent=27 // pred_fallthru
          _
        // Predicated region
        $region37: #{tpu_custom_call.1} parent=27 // pred_check
          %p305 = pneg %p110
        $region38: #{tpu_custom_call.1} parent=27 // pred_check_branch
          %307 = sbr.rel (%p305) target = $region40
        $region39: #{tpu_custom_call.1} parent=27 // pred_region
          %s308 = smul.u32 %s21, 3
          %s309 = sadd.s32 %s308, %s22
          %p310 = scmp.lt.s32.totalorder %s309, 2
          %s311 = scalar_select %p310, %s309, 2
          %s312 = scalar_lea.vmem %s2, %s311
          %s313 = smul.u32 %s21, 3
          %s314 = sadd.s32 %s313, %s22
        $region40: #{tpu_custom_call.1} parent=27 // pred_fallthru
          _
      $region28: #{tpu_custom_call.1} parent=5 // pred_fallthru
        _
      %p315 = scmp.le.s32.totalorder 1, %s14
      %p316 = scmp.lt.s32.totalorder %s14, 4
      %p317 = pnand %p315, %p316
      %p318 = pneg %p317
      // Predicated region
      $region41: #{tpu_custom_call.1} parent=5 // pred_check
        _
      $region42: #{tpu_custom_call.1} parent=5 // pred_check_branch
        %320 = sbr.rel (%p317) target = $region44
      $region43: #{tpu_custom_call.1} parent=5 // pred_region
        %s321 = ssub.s32 %s14, 1
        %s322 = smul.u32 %s23, 3
        %s323 = sadd.s32 %s322, %s24
        %s324 = smul.u32 16, %s323
        %s325 = ssub.s32 38, %s324
        %p326 = scmp.lt.s32.totalorder %s325, 16
        %s327 = scalar_select %p326, %s325, 16
        %s328 = smul.u32 8, %s327
        %p329 = scmp.lt.s32.totalorder %s324, 37
        %s330 = scalar_select %p329, %s324, 37
        %s331 = smul.addr %s330, 8
        %s332 = scalar_lea.vmem %s0, %s331
        %p333 = pneg %p56
        %p334 = pneg %p53
        %s335 = smul.u32 %s23, 3
        %s336 = sadd.s32 %s335, %s24
        %s337 = smul.u32 16, %s336
        %s338 = ssub.s32 38, %s337
        %p339 = scmp.lt.s32.totalorder %s338, 16
        %s340 = scalar_select %p339, %s338, 16
        %s341 = smul.u32 8, %s340
        %p342 = scmp.lt.s32.totalorder %s337, 37
        %s343 = scalar_select %p342, %s337, 37
        %s344 = smul.addr %s343, 8
        %s345 = scalar_lea.vmem %s1, %s344
        %p346 = pneg %p86
        %p347 = pneg %p83
        %s348 = smul.u32 %s23, 3
        %s349 = sadd.s32 %s348, %s24
        %p350 = scmp.lt.s32.totalorder %s349, 2
        %s351 = scalar_select %p350, %s349, 2
        %s352 = scalar_lea.vmem %s2, %s351
        %p353 = pneg %p116
        %p354 = pneg %p113
        %p355 = pneg %p137
        %p356 = pneg %p134
        %p357 = pneg %p158
        %p358 = pneg %p155
        %p359 = pneg %p179
        %p360 = pneg %p176
        %p361 = pneg %p209
        %p362 = pneg %p206
        %s363 = sand.u32 %s196, 1
        %s364 = sand.u32 %s196, 1
        %s365 = smul.addr %s364, 128
        %s366 = scalar_lea.vmem [#allocation2], %s365
        %p367 = pneg %p235
        %p368 = pneg %p232
        %p369 = scmp.lt.s32.totalorder %s23, 0
        %s370 = scalar_select %p369, %s23, 0
        %s371 = smul.addr %s370, 8
        %s372 = scalar_lea.vmem %s7, %s371
        %s373 = smul.u32 %s23, 3
        %s374 = sadd.s32 %s373, %s24
        %s375 = smul.u32 16, %s374
        %s376 = ssub.s32 38, %s375
        %p377 = scmp.lt.s32.totalorder %s376, 16
        %s378 = scalar_select %p377, %s376, 16
        %s379 = smul.u32 8, %s378
        %p380 = scmp.lt.s32.totalorder %s375, 37
        %s381 = scalar_select %p380, %s375, 37
        %s382 = smul.addr %s381, 8
        %s383 = scalar_lea.vmem %s0, %s382
        %s384 = smul.u32 %s23, 3
        %s385 = sadd.s32 %s384, %s24
        %s386 = smul.u32 16, %s385
        %s387 = ssub.s32 38, %s386
        %p388 = scmp.lt.s32.totalorder %s387, 16
        %s389 = scalar_select %p388, %s387, 16
        %s390 = smul.u32 8, %s389
        %s391 = smul.u32 %s23, 3
        %s392 = sadd.s32 %s391, %s24
        %s393 = smul.u32 16, %s392
        %s394 = ssub.s32 38, %s393
        %p395 = scmp.lt.s32.totalorder %s394, 16
        %s396 = scalar_select %p395, %s394, 16
        %s397 = smul.u32 8, %s396
        %p398 = scmp.lt.s32.totalorder %s393, 37
        %s399 = scalar_select %p398, %s393, 37
        %s400 = smul.addr %s399, 8
        %s401 = scalar_lea.vmem %s1, %s400
        %s402 = smul.u32 %s23, 3
        %s403 = sadd.s32 %s402, %s24
        %s404 = smul.u32 16, %s403
        %s405 = ssub.s32 38, %s404
        %p406 = scmp.lt.s32.totalorder %s405, 16
        %s407 = scalar_select %p406, %s405, 16
        %s408 = smul.u32 8, %s407
        %s409 = smul.u32 %s23, 3
        %s410 = sadd.s32 %s409, %s24
        %p411 = scmp.lt.s32.totalorder %s410, 2
        %s412 = scalar_select %p411, %s410, 2
        %s413 = scalar_lea.vmem %s2, %s412
        %s414 = smul.u32 %s23, 3
        %s415 = sadd.s32 %s414, %s24
        %s416 = smul.u32 %s23, 3
        %s417 = sadd.s32 %s416, %s24
        %s418 = smul.u32 16, %s417
        %s419 = ssub.s32 38, %s418
        %p420 = scmp.lt.s32.totalorder %s419, 16
        %s421 = scalar_select %p420, %s419, 16
        %s422 = smul.u32 8, %s421
        %p423 = scmp.lt.s32.totalorder %s23, 0
        %s424 = scalar_select %p423, %s23, 0
        %s425 = smul.addr %s424, 8
        %s426 = scalar_lea.vmem %s7, %s425
        %v428 = vld [vmem:[%s383] sm:$0xff]
        %v429 = vld [vmem:[%s383 + $0x8] sm:$0xff]
        %v430 = vld [vmem:[%s383 + $0x10] sm:$0xff]
        %v431 = vld [vmem:[%s383 + $0x18] sm:$0xff]
        %v432 = vld [vmem:[%s383 + $0x20] sm:$0xff]
        %v433 = vld [vmem:[%s383 + $0x28] sm:$0xff]
        %v434 = vld [vmem:[%s383 + $0x30] sm:$0xff]
        %v435 = vld [vmem:[%s383 + $0x38] sm:$0xff]
        %v436 = vld [vmem:[%s383 + $0x40] sm:$0xff]
        %v437 = vld [vmem:[%s383 + $0x48] sm:$0xff]
        %v438 = vld [vmem:[%s383 + $0x50] sm:$0xff]
        %v439 = vld [vmem:[%s383 + $0x58] sm:$0xff]
        %v440 = vld [vmem:[%s383 + $0x60] sm:$0xff]
        %v441 = vld [vmem:[%s383 + $0x68] sm:$0xff]
        %v442 = vld [vmem:[%s383 + $0x70] sm:$0xff]
        %v443 = vld [vmem:[%s383 + $0x78] sm:$0xff]
        %v444 = vpack.c.bf16 %v429, %v428
        %v445 = vpack.c.bf16 %v431, %v430
        %v446 = vpack.c.bf16 %v433, %v432
        %v447 = vpack.c.bf16 %v435, %v434
        %v448 = vpack.c.bf16 %v437, %v436
        %v449 = vpack.c.bf16 %v439, %v438
        %v450 = vpack.c.bf16 %v441, %v440
        %v451 = vpack.c.bf16 %v443, %v442
        %v452 = vld [vmem:[%s401] sm:$0xff]
        %v453 = vld [vmem:[%s401 + $0x8] sm:$0xff]
        %v454 = vld [vmem:[%s401 + $0x10] sm:$0xff]
        %v455 = vld [vmem:[%s401 + $0x18] sm:$0xff]
        %v456 = vld [vmem:[%s401 + $0x20] sm:$0xff]
        %v457 = vld [vmem:[%s401 + $0x28] sm:$0xff]
        %v458 = vld [vmem:[%s401 + $0x30] sm:$0xff]
        %v459 = vld [vmem:[%s401 + $0x38] sm:$0xff]
        %v460 = vld [vmem:[%s401 + $0x40] sm:$0xff]
        %v461 = vld [vmem:[%s401 + $0x48] sm:$0xff]
        %v462 = vld [vmem:[%s401 + $0x50] sm:$0xff]
        %v463 = vld [vmem:[%s401 + $0x58] sm:$0xff]
        %v464 = vld [vmem:[%s401 + $0x60] sm:$0xff]
        %v465 = vld [vmem:[%s401 + $0x68] sm:$0xff]
        %v466 = vld [vmem:[%s401 + $0x70] sm:$0xff]
        %v467 = vld [vmem:[%s401 + $0x78] sm:$0xff]
        %v468 = vpack.c.bf16 %v453, %v452
        %v469 = vpack.c.bf16 %v455, %v454
        %v470 = vpack.c.bf16 %v457, %v456
        %v471 = vpack.c.bf16 %v459, %v458
        %v472 = vpack.c.bf16 %v461, %v460
        %v473 = vpack.c.bf16 %v463, %v462
        %v474 = vpack.c.bf16 %v465, %v464
        %v475 = vpack.c.bf16 %v467, %v466
        %v476 = vld [vmem:[%s4] sm:$0xf]
        %v477 = vld [vmem:[%s4 + $0x4] sm:$0xf]
        %v478 = vld [vmem:[%s4 + $0x8] sm:$0xf]
        %v479 = vld [vmem:[%s4 + $0xc] sm:$0xf]
        %v480 = vld [vmem:[%s5] sm:$0x1]
        %v482 = vperm.slane %v480, 0
        %v488 = vunpack.c.l.b16 %v476
        %v489 = vunpack.c.l.b16 %v477
        %v490 = vunpack.c.l.b16 %v478
        %v491 = vunpack.c.l.b16 %v479
        %v492 = vpack.c.b16 %v489, %v488
        %v493 = vpack.c.b16 %v491, %v490
        %vm496 = vcmask 261120
        %v498 = vsel %vm496, %v468, 0
        %v501 = vsel %vm496, %v469, 0
        %v504 = vsel %vm496, %v470, 0
        %v507 = vsel %vm496, %v471, 0
        %v510 = vsel %vm496, %v472, 0
        %v513 = vsel %vm496, %v473, 0
        %v516 = vsel %vm496, %v474, 0
        %v519 = vsel %vm496, %v475, 0
        %521 = vmatpush.bf16.msra.mxu0 0
        %522 = vmatpush.bf16.msra.mxu0 0
        %523 = vmatpush.bf16.msra.mxu0 0
        %524 = vmatpush.bf16.msra.mxu0 0
        %525 = vmatpush.bf16.msra.mxu0 0
        %526 = vmatpush.bf16.msra.mxu0 0
        %527 = vmatpush.bf16.msra.mxu0 %v493
        %528 = vmatpush.bf16.msra.mxu0 %v492
        %529 = vmatmul.bf16.gmra.mxu0 %v498
        %v530 = vpop.f32.mrf.mxu0
        %v531 = vadd.f32 %v482, %v530
        %v532 = vpop.f32.mrf.mxu0
        %v533 = vadd.f32 %v482, %v532
        %534 = vmatmul.bf16.gmra.mxu0 %v501
        %v535 = vpop.f32.mrf.mxu0
        %v536 = vadd.f32 %v482, %v535
        %v537 = vpop.f32.mrf.mxu0
        %v538 = vadd.f32 %v482, %v537
        %539 = vmatmul.bf16.gmra.mxu0 %v504
        %v540 = vpop.f32.mrf.mxu0
        %v541 = vadd.f32 %v482, %v540
        %v542 = vpop.f32.mrf.mxu0
        %v543 = vadd.f32 %v482, %v542
        %544 = vmatmul.bf16.gmra.mxu0 %v507
        %v545 = vpop.f32.mrf.mxu0
        %v546 = vadd.f32 %v482, %v545
        %v547 = vpop.f32.mrf.mxu0
        %v548 = vadd.f32 %v482, %v547
        %549 = vmatmul.bf16.gmra.mxu0 %v510
        %v550 = vpop.f32.mrf.mxu0
        %v551 = vadd.f32 %v482, %v550
        %v552 = vpop.f32.mrf.mxu0
        %v553 = vadd.f32 %v482, %v552
        %554 = vmatmul.bf16.gmra.mxu0 %v513
        %v555 = vpop.f32.mrf.mxu0
        %v556 = vadd.f32 %v482, %v555
        %v557 = vpop.f32.mrf.mxu0
        %v558 = vadd.f32 %v482, %v557
        %559 = vmatmul.bf16.gmra.mxu0 %v516
        %v560 = vpop.f32.mrf.mxu0
        %v561 = vadd.f32 %v482, %v560
        %v562 = vpop.f32.mrf.mxu0
        %v563 = vadd.f32 %v482, %v562
        %564 = vmatmul.bf16.gmra.mxu0 %v519
        %v565 = vpop.f32.mrf.mxu0
        %v566 = vadd.f32 %v482, %v565
        %v567 = vpop.f32.mrf.mxu0
        %v568 = vadd.f32 %v482, %v567
        %569 = vdwg.mxu0
        %v570 = vld [vmem:[%s3] sm:$0xf]
        %v571 = vld [vmem:[%s3 + $0x4] sm:$0xf]
        %v572 = vld [vmem:[%s3 + $0x8] sm:$0xf]
        %v573 = vld [vmem:[%s3 + $0xc] sm:$0xf]
        %v578 = vunpack.c.l.b16 %v570
        %v579 = vunpack.c.l.b16 %v571
        %v580 = vunpack.c.l.b16 %v572
        %v581 = vunpack.c.l.b16 %v573
        %v582 = vpack.c.b16 %v579, %v578
        %v583 = vpack.c.b16 %v581, %v580
        %v587 = vsel %vm496, %v444, 0
        %v590 = vsel %vm496, %v445, 0
        %v593 = vsel %vm496, %v446, 0
        %v596 = vsel %vm496, %v447, 0
        %v599 = vsel %vm496, %v448, 0
        %v602 = vsel %vm496, %v449, 0
        %v605 = vsel %vm496, %v450, 0
        %v608 = vsel %vm496, %v451, 0
        %610 = vmatpush.bf16.msra.mxu0 0
        %611 = vmatpush.bf16.msra.mxu0 0
        %612 = vmatpush.bf16.msra.mxu0 0
        %613 = vmatpush.bf16.msra.mxu0 0
        %614 = vmatpush.bf16.msra.mxu0 0
        %615 = vmatpush.bf16.msra.mxu0 0
        %616 = vmatpush.bf16.msra.mxu0 %v583
        %617 = vmatpush.bf16.msra.mxu0 %v582
        %618 = vmatmul.bf16.gmra.mxu0 %v587
        %v619 = vpop.f32.mrf.mxu0
        %v620 = vadd.f32 %v531, %v619
        %v621 = vpop.f32.mrf.mxu0
        %v622 = vadd.f32 %v533, %v621
        %623 = vmatmul.bf16.gmra.mxu0 %v590
        %v624 = vpop.f32.mrf.mxu0
        %v625 = vadd.f32 %v536, %v624
        %v626 = vpop.f32.mrf.mxu0
        %v627 = vadd.f32 %v538, %v626
        %628 = vmatmul.bf16.gmra.mxu0 %v593
        %v629 = vpop.f32.mrf.mxu0
        %v630 = vadd.f32 %v541, %v629
        %v631 = vpop.f32.mrf.mxu0
        %v632 = vadd.f32 %v543, %v631
        %633 = vmatmul.bf16.gmra.mxu0 %v596
        %v634 = vpop.f32.mrf.mxu0
        %v635 = vadd.f32 %v546, %v634
        %v636 = vpop.f32.mrf.mxu0
        %v637 = vadd.f32 %v548, %v636
        %638 = vmatmul.bf16.gmra.mxu0 %v599
        %v639 = vpop.f32.mrf.mxu0
        %v640 = vadd.f32 %v551, %v639
        %v641 = vpop.f32.mrf.mxu0
        %v642 = vadd.f32 %v553, %v641
        %643 = vmatmul.bf16.gmra.mxu0 %v602
        %v644 = vpop.f32.mrf.mxu0
        %v645 = vadd.f32 %v556, %v644
        %v646 = vpop.f32.mrf.mxu0
        %v647 = vadd.f32 %v558, %v646
        %648 = vmatmul.bf16.gmra.mxu0 %v605
        %v649 = vpop.f32.mrf.mxu0
        %v650 = vadd.f32 %v561, %v649
        %v651 = vpop.f32.mrf.mxu0
        %v652 = vadd.f32 %v563, %v651
        %653 = vmatmul.bf16.gmra.mxu0 %v608
        %v654 = vpop.f32.mrf.mxu0
        %v655 = vadd.f32 %v566, %v654
        %v656 = vpop.f32.mrf.mxu0
        %v657 = vadd.f32 %v568, %v656
        %658 = vdwg.mxu0
        %v659 = vxor.u32 %v620, 2147483648
        %v660 = vxor.u32 %v622, 2147483648
        %v661 = vxor.u32 %v625, 2147483648
        %v662 = vxor.u32 %v627, 2147483648
        %v663 = vxor.u32 %v630, 2147483648
        %v664 = vxor.u32 %v632, 2147483648
        %v665 = vxor.u32 %v635, 2147483648
        %v666 = vxor.u32 %v637, 2147483648
        %v667 = vxor.u32 %v640, 2147483648
        %v668 = vxor.u32 %v642, 2147483648
        %v669 = vxor.u32 %v645, 2147483648
        %v670 = vxor.u32 %v647, 2147483648
        %v671 = vxor.u32 %v650, 2147483648
        %v672 = vxor.u32 %v652, 2147483648
        %v673 = vxor.u32 %v655, 2147483648
        %v674 = vxor.u32 %v657, 2147483648
        %v675 = vmul.f32 %v659, 1.442695
        %v676 = vpow.pop %v675
        %v677 = vmul.f32 %v660, 1.442695
        %v678 = vpow.pop %v677
        %v679 = vmul.f32 %v661, 1.442695
        %v680 = vpow.pop %v679
        %v681 = vmul.f32 %v662, 1.442695
        %v682 = vpow.pop %v681
        %v683 = vmul.f32 %v663, 1.442695
        %v684 = vpow.pop %v683
        %v685 = vmul.f32 %v664, 1.442695
        %v686 = vpow.pop %v685
        %v687 = vmul.f32 %v665, 1.442695
        %v688 = vpow.pop %v687
        %v689 = vmul.f32 %v666, 1.442695
        %v690 = vpow.pop %v689
        %v691 = vmul.f32 %v667, 1.442695
        %v692 = vpow.pop %v691
        %v693 = vmul.f32 %v668, 1.442695
        %v694 = vpow.pop %v693
        %v695 = vmul.f32 %v669, 1.442695
        %v696 = vpow.pop %v695
        %v697 = vmul.f32 %v670, 1.442695
        %v698 = vpow.pop %v697
        %v699 = vmul.f32 %v671, 1.442695
        %v700 = vpow.pop %v699
        %v701 = vmul.f32 %v672, 1.442695
        %v702 = vpow.pop %v701
        %v703 = vmul.f32 %v673, 1.442695
        %v704 = vpow.pop %v703
        %v705 = vmul.f32 %v674, 1.442695
        %v706 = vpow.pop %v705
        %v707 = vadd.f32 %v676, 1.0
        %v708 = vadd.f32 %v678, 1.0
        %v709 = vadd.f32 %v680, 1.0
        %v710 = vadd.f32 %v682, 1.0
        %v711 = vadd.f32 %v684, 1.0
        %v712 = vadd.f32 %v686, 1.0
        %v713 = vadd.f32 %v688, 1.0
        %v714 = vadd.f32 %v690, 1.0
        %v715 = vadd.f32 %v692, 1.0
        %v716 = vadd.f32 %v694, 1.0
        %v717 = vadd.f32 %v696, 1.0
        %v718 = vadd.f32 %v698, 1.0
        %v719 = vadd.f32 %v700, 1.0
        %v720 = vadd.f32 %v702, 1.0
        %v721 = vadd.f32 %v704, 1.0
        %v722 = vadd.f32 %v706, 1.0
        %v723 = vrcp.pop %v707
        %v724 = vmul.f32 %v707, %v723
        %v725 = vsub.f32 1.0, %v724
        %v726 = vmul.f32 %v723, %v725
        %v727 = vadd.f32 %v723, %v726
        %vm728 = vweird.f32 %v707
        %vm729 = vweird.f32 %v723
        %vm730 = vmor %vm728, %vm729
        %v731 = vsel %vm730, %v723, %v727
        %v732 = vand.u32 2147483647, %v707
        %vm733 = vcmp.eq.f32.partialorder %v732, 8.507059e+37
        %v734 = vand.u32 %v707, 2147483648
        %v735 = vor.u32 1.1754944e-38, %v734
        %v736 = vsel %vm733, %v735, %v731
        %v737 = vmul.f32 1.0, %v736
        %v738 = vrcp.pop %v708
        %v739 = vmul.f32 %v708, %v738
        %v740 = vsub.f32 1.0, %v739
        %v741 = vmul.f32 %v738, %v740
        %v742 = vadd.f32 %v738, %v741
        %vm743 = vweird.f32 %v708
        %vm744 = vweird.f32 %v738
        %vm745 = vmor %vm743, %vm744
        %v746 = vsel %vm745, %v738, %v742
        %v747 = vand.u32 2147483647, %v708
        %vm748 = vcmp.eq.f32.partialorder %v747, 8.507059e+37
        %v749 = vand.u32 %v708, 2147483648
        %v750 = vor.u32 1.1754944e-38, %v749
        %v751 = vsel %vm748, %v750, %v746
        %v752 = vmul.f32 1.0, %v751
        %v753 = vrcp.pop %v709
        %v754 = vmul.f32 %v709, %v753
        %v755 = vsub.f32 1.0, %v754
        %v756 = vmul.f32 %v753, %v755
        %v757 = vadd.f32 %v753, %v756
        %vm758 = vweird.f32 %v709
        %vm759 = vweird.f32 %v753
        %vm760 = vmor %vm758, %vm759
        %v761 = vsel %vm760, %v753, %v757
        %v762 = vand.u32 2147483647, %v709
        %vm763 = vcmp.eq.f32.partialorder %v762, 8.507059e+37
        %v764 = vand.u32 %v709, 2147483648
        %v765 = vor.u32 1.1754944e-38, %v764
        %v766 = vsel %vm763, %v765, %v761
        %v767 = vmul.f32 1.0, %v766
        %v768 = vrcp.pop %v710
        %v769 = vmul.f32 %v710, %v768
        %v770 = vsub.f32 1.0, %v769
        %v771 = vmul.f32 %v768, %v770
        %v772 = vadd.f32 %v768, %v771
        %vm773 = vweird.f32 %v710
        %vm774 = vweird.f32 %v768
        %vm775 = vmor %vm773, %vm774
        %v776 = vsel %vm775, %v768, %v772
        %v777 = vand.u32 2147483647, %v710
        %vm778 = vcmp.eq.f32.partialorder %v777, 8.507059e+37
        %v779 = vand.u32 %v710, 2147483648
        %v780 = vor.u32 1.1754944e-38, %v779
        %v781 = vsel %vm778, %v780, %v776
        %v782 = vmul.f32 1.0, %v781
        %v783 = vrcp.pop %v711
        %v784 = vmul.f32 %v711, %v783
        %v785 = vsub.f32 1.0, %v784
        %v786 = vmul.f32 %v783, %v785
        %v787 = vadd.f32 %v783, %v786
        %vm788 = vweird.f32 %v711
        %vm789 = vweird.f32 %v783
        %vm790 = vmor %vm788, %vm789
        %v791 = vsel %vm790, %v783, %v787
        %v792 = vand.u32 2147483647, %v711
        %vm793 = vcmp.eq.f32.partialorder %v792, 8.507059e+37
        %v794 = vand.u32 %v711, 2147483648
        %v795 = vor.u32 1.1754944e-38, %v794
        %v796 = vsel %vm793, %v795, %v791
        %v797 = vmul.f32 1.0, %v796
        %v798 = vrcp.pop %v712
        %v799 = vmul.f32 %v712, %v798
        %v800 = vsub.f32 1.0, %v799
        %v801 = vmul.f32 %v798, %v800
        %v802 = vadd.f32 %v798, %v801
        %vm803 = vweird.f32 %v712
        %vm804 = vweird.f32 %v798
        %vm805 = vmor %vm803, %vm804
        %v806 = vsel %vm805, %v798, %v802
        %v807 = vand.u32 2147483647, %v712
        %vm808 = vcmp.eq.f32.partialorder %v807, 8.507059e+37
        %v809 = vand.u32 %v712, 2147483648
        %v810 = vor.u32 1.1754944e-38, %v809
        %v811 = vsel %vm808, %v810, %v806
        %v812 = vmul.f32 1.0, %v811
        %v813 = vrcp.pop %v713
        %v814 = vmul.f32 %v713, %v813
        %v815 = vsub.f32 1.0, %v814
        %v816 = vmul.f32 %v813, %v815
        %v817 = vadd.f32 %v813, %v816
        %vm818 = vweird.f32 %v713
        %vm819 = vweird.f32 %v813
        %vm820 = vmor %vm818, %vm819
        %v821 = vsel %vm820, %v813, %v817
        %v822 = vand.u32 2147483647, %v713
        %vm823 = vcmp.eq.f32.partialorder %v822, 8.507059e+37
        %v824 = vand.u32 %v713, 2147483648
        %v825 = vor.u32 1.1754944e-38, %v824
        %v826 = vsel %vm823, %v825, %v821
        %v827 = vmul.f32 1.0, %v826
        %v828 = vrcp.pop %v714
        %v829 = vmul.f32 %v714, %v828
        %v830 = vsub.f32 1.0, %v829
        %v831 = vmul.f32 %v828, %v830
        %v832 = vadd.f32 %v828, %v831
        %vm833 = vweird.f32 %v714
        %vm834 = vweird.f32 %v828
        %vm835 = vmor %vm833, %vm834
        %v836 = vsel %vm835, %v828, %v832
        %v837 = vand.u32 2147483647, %v714
        %vm838 = vcmp.eq.f32.partialorder %v837, 8.507059e+37
        %v839 = vand.u32 %v714, 2147483648
        %v840 = vor.u32 1.1754944e-38, %v839
        %v841 = vsel %vm838, %v840, %v836
        %v842 = vmul.f32 1.0, %v841
        %v843 = vrcp.pop %v715
        %v844 = vmul.f32 %v715, %v843
        %v845 = vsub.f32 1.0, %v844
        %v846 = vmul.f32 %v843, %v845
        %v847 = vadd.f32 %v843, %v846
        %vm848 = vweird.f32 %v715
        %vm849 = vweird.f32 %v843
        %vm850 = vmor %vm848, %vm849
        %v851 = vsel %vm850, %v843, %v847
        %v852 = vand.u32 2147483647, %v715
        %vm853 = vcmp.eq.f32.partialorder %v852, 8.507059e+37
        %v854 = vand.u32 %v715, 2147483648
        %v855 = vor.u32 1.1754944e-38, %v854
        %v856 = vsel %vm853, %v855, %v851
        %v857 = vmul.f32 1.0, %v856
        %v858 = vrcp.pop %v716
        %v859 = vmul.f32 %v716, %v858
        %v860 = vsub.f32 1.0, %v859
        %v861 = vmul.f32 %v858, %v860
        %v862 = vadd.f32 %v858, %v861
        %vm863 = vweird.f32 %v716
        %vm864 = vweird.f32 %v858
        %vm865 = vmor %vm863, %vm864
        %v866 = vsel %vm865, %v858, %v862
        %v867 = vand.u32 2147483647, %v716
        %vm868 = vcmp.eq.f32.partialorder %v867, 8.507059e+37
        %v869 = vand.u32 %v716, 2147483648
        %v870 = vor.u32 1.1754944e-38, %v869
        %v871 = vsel %vm868, %v870, %v866
        %v872 = vmul.f32 1.0, %v871
        %v873 = vrcp.pop %v717
        %v874 = vmul.f32 %v717, %v873
        %v875 = vsub.f32 1.0, %v874
        %v876 = vmul.f32 %v873, %v875
        %v877 = vadd.f32 %v873, %v876
        %vm878 = vweird.f32 %v717
        %vm879 = vweird.f32 %v873
        %vm880 = vmor %vm878, %vm879
        %v881 = vsel %vm880, %v873, %v877
        %v882 = vand.u32 2147483647, %v717
        %vm883 = vcmp.eq.f32.partialorder %v882, 8.507059e+37
        %v884 = vand.u32 %v717, 2147483648
        %v885 = vor.u32 1.1754944e-38, %v884
        %v886 = vsel %vm883, %v885, %v881
        %v887 = vmul.f32 1.0, %v886
        %v888 = vrcp.pop %v718
        %v889 = vmul.f32 %v718, %v888
        %v890 = vsub.f32 1.0, %v889
        %v891 = vmul.f32 %v888, %v890
        %v892 = vadd.f32 %v888, %v891
        %vm893 = vweird.f32 %v718
        %vm894 = vweird.f32 %v888
        %vm895 = vmor %vm893, %vm894
        %v896 = vsel %vm895, %v888, %v892
        %v897 = vand.u32 2147483647, %v718
        %vm898 = vcmp.eq.f32.partialorder %v897, 8.507059e+37
        %v899 = vand.u32 %v718, 2147483648
        %v900 = vor.u32 1.1754944e-38, %v899
        %v901 = vsel %vm898, %v900, %v896
        %v902 = vmul.f32 1.0, %v901
        %v903 = vrcp.pop %v719
        %v904 = vmul.f32 %v719, %v903
        %v905 = vsub.f32 1.0, %v904
        %v906 = vmul.f32 %v903, %v905
        %v907 = vadd.f32 %v903, %v906
        %vm908 = vweird.f32 %v719
        %vm909 = vweird.f32 %v903
        %vm910 = vmor %vm908, %vm909
        %v911 = vsel %vm910, %v903, %v907
        %v912 = vand.u32 2147483647, %v719
        %vm913 = vcmp.eq.f32.partialorder %v912, 8.507059e+37
        %v914 = vand.u32 %v719, 2147483648
        %v915 = vor.u32 1.1754944e-38, %v914
        %v916 = vsel %vm913, %v915, %v911
        %v917 = vmul.f32 1.0, %v916
        %v918 = vrcp.pop %v720
        %v919 = vmul.f32 %v720, %v918
        %v920 = vsub.f32 1.0, %v919
        %v921 = vmul.f32 %v918, %v920
        %v922 = vadd.f32 %v918, %v921
        %vm923 = vweird.f32 %v720
        %vm924 = vweird.f32 %v918
        %vm925 = vmor %vm923, %vm924
        %v926 = vsel %vm925, %v918, %v922
        %v927 = vand.u32 2147483647, %v720
        %vm928 = vcmp.eq.f32.partialorder %v927, 8.507059e+37
        %v929 = vand.u32 %v720, 2147483648
        %v930 = vor.u32 1.1754944e-38, %v929
        %v931 = vsel %vm928, %v930, %v926
        %v932 = vmul.f32 1.0, %v931
        %v933 = vrcp.pop %v721
        %v934 = vmul.f32 %v721, %v933
        %v935 = vsub.f32 1.0, %v934
        %v936 = vmul.f32 %v933, %v935
        %v937 = vadd.f32 %v933, %v936
        %vm938 = vweird.f32 %v721
        %vm939 = vweird.f32 %v933
        %vm940 = vmor %vm938, %vm939
        %v941 = vsel %vm940, %v933, %v937
        %v942 = vand.u32 2147483647, %v721
        %vm943 = vcmp.eq.f32.partialorder %v942, 8.507059e+37
        %v944 = vand.u32 %v721, 2147483648
        %v945 = vor.u32 1.1754944e-38, %v944
        %v946 = vsel %vm943, %v945, %v941
        %v947 = vmul.f32 1.0, %v946
        %v948 = vrcp.pop %v722
        %v949 = vmul.f32 %v722, %v948
        %v950 = vsub.f32 1.0, %v949
        %v951 = vmul.f32 %v948, %v950
        %v952 = vadd.f32 %v948, %v951
        %vm953 = vweird.f32 %v722
        %vm954 = vweird.f32 %v948
        %vm955 = vmor %vm953, %vm954
        %v956 = vsel %vm955, %v948, %v952
        %v957 = vand.u32 2147483647, %v722
        %vm958 = vcmp.eq.f32.partialorder %v957, 8.507059e+37
        %v959 = vand.u32 %v722, 2147483648
        %v960 = vor.u32 1.1754944e-38, %v959
        %v961 = vsel %vm958, %v960, %v956
        %v962 = vmul.f32 1.0, %v961
        %979 = vrot.lane.b32.xlu0 %v531, 120
        %v980 = vpop.permute.xlu0 %979
        %981 = vrot.lane.b32.xlu0 %v533, 120
        %v982 = vpop.permute.xlu0 %981
        %983 = vrot.lane.b32.xlu0 %v536, 120
        %v984 = vpop.permute.xlu0 %983
        %985 = vrot.lane.b32.xlu0 %v538, 120
        %v986 = vpop.permute.xlu0 %985
        %987 = vrot.lane.b32.xlu0 %v541, 120
        %v988 = vpop.permute.xlu0 %987
        %989 = vrot.lane.b32.xlu0 %v543, 120
        %v990 = vpop.permute.xlu0 %989
        %991 = vrot.lane.b32.xlu0 %v546, 120
        %v992 = vpop.permute.xlu0 %991
        %993 = vrot.lane.b32.xlu0 %v548, 120
        %v994 = vpop.permute.xlu0 %993
        %995 = vrot.lane.b32.xlu0 %v551, 120
        %v996 = vpop.permute.xlu0 %995
        %997 = vrot.lane.b32.xlu0 %v553, 120
        %v998 = vpop.permute.xlu0 %997
        %999 = vrot.lane.b32.xlu0 %v556, 120
        %v1000 = vpop.permute.xlu0 %999
        %1001 = vrot.lane.b32.xlu0 %v558, 120
        %v1002 = vpop.permute.xlu0 %1001
        %1003 = vrot.lane.b32.xlu0 %v561, 120
        %v1004 = vpop.permute.xlu0 %1003
        %1005 = vrot.lane.b32.xlu0 %v563, 120
        %v1006 = vpop.permute.xlu0 %1005
        %1007 = vrot.lane.b32.xlu0 %v566, 120
        %v1008 = vpop.permute.xlu0 %1007
        %1009 = vrot.lane.b32.xlu0 %v568, 120
        %v1010 = vpop.permute.xlu0 %1009
        %v1027 = vmul.f32 %v737, %v980
        %v1028 = vmul.f32 %v752, %v982
        %v1029 = vmul.f32 %v767, %v984
        %v1030 = vmul.f32 %v782, %v986
        %v1031 = vmul.f32 %v797, %v988
        %v1032 = vmul.f32 %v812, %v990
        %v1033 = vmul.f32 %v827, %v992
        %v1034 = vmul.f32 %v842, %v994
        %v1035 = vmul.f32 %v857, %v996
        %v1036 = vmul.f32 %v872, %v998
        %v1037 = vmul.f32 %v887, %v1000
        %v1038 = vmul.f32 %v902, %v1002
        %v1039 = vmul.f32 %v917, %v1004
        %v1040 = vmul.f32 %v932, %v1006
        %v1041 = vmul.f32 %v947, %v1008
        %v1042 = vmul.f32 %v962, %v1010
        %s1043 = smul.u32 %s23, 3
        %s1044 = sadd.s32 %s1043, %s24
        %s1045 = smul.u32 %s1044, 128
        %v1046 = vlaneseq
        %v1047 = vshrl.u32 %v1046, 7
        %v1048 = vadd.s32 %v1047, 8
        %v1049 = vadd.s32 %v1047, 16
        %v1050 = vadd.s32 %v1047, 24
        %v1051 = vadd.s32 %v1047, 32
        %v1052 = vadd.s32 %v1047, 40
        %v1053 = vadd.s32 %v1047, 48
        %v1054 = vadd.s32 %v1047, 56
        %v1055 = vadd.s32 %v1047, 64
        %v1056 = vadd.s32 %v1047, 72
        %v1057 = vadd.s32 %v1047, 80
        %v1058 = vadd.s32 %v1047, 88
        %v1059 = vadd.s32 %v1047, 96
        %v1060 = vadd.s32 %v1047, 104
        %v1061 = vadd.s32 %v1047, 112
        %v1062 = vadd.s32 %v1047, 120
        %v1063 = vstv %s1045
        %v1064 = vadd.s32 %v1063, %v1047
        %v1065 = vadd.s32 %v1063, %v1048
        %v1066 = vadd.s32 %v1063, %v1049
        %v1067 = vadd.s32 %v1063, %v1050
        %v1068 = vadd.s32 %v1063, %v1051
        %v1069 = vadd.s32 %v1063, %v1052
        %v1070 = vadd.s32 %v1063, %v1053
        %v1071 = vadd.s32 %v1063, %v1054
        %v1072 = vadd.s32 %v1063, %v1055
        %v1073 = vadd.s32 %v1063, %v1056
        %v1074 = vadd.s32 %v1063, %v1057
        %v1075 = vadd.s32 %v1063, %v1058
        %v1076 = vadd.s32 %v1063, %v1059
        %v1077 = vadd.s32 %v1063, %v1060
        %v1078 = vadd.s32 %v1063, %v1061
        %v1079 = vadd.s32 %v1063, %v1062
        %vm1080 = vcmp.lt.s32.totalorder %v1064, 300
        %vm1081 = vcmp.lt.s32.totalorder %v1065, 300
        %vm1082 = vcmp.lt.s32.totalorder %v1066, 300
        %vm1083 = vcmp.lt.s32.totalorder %v1067, 300
        %vm1084 = vcmp.lt.s32.totalorder %v1068, 300
        %vm1085 = vcmp.lt.s32.totalorder %v1069, 300
        %vm1086 = vcmp.lt.s32.totalorder %v1070, 300
        %vm1087 = vcmp.lt.s32.totalorder %v1071, 300
        %vm1088 = vcmp.lt.s32.totalorder %v1072, 300
        %vm1089 = vcmp.lt.s32.totalorder %v1073, 300
        %vm1090 = vcmp.lt.s32.totalorder %v1074, 300
        %vm1091 = vcmp.lt.s32.totalorder %v1075, 300
        %vm1092 = vcmp.lt.s32.totalorder %v1076, 300
        %vm1093 = vcmp.lt.s32.totalorder %v1077, 300
        %vm1094 = vcmp.lt.s32.totalorder %v1078, 300
        %vm1095 = vcmp.lt.s32.totalorder %v1079, 300
        %v1096 = vsel %vm1080, 1, 0
        %v1097 = vsel %vm1081, 1, 0
        %v1098 = vsel %vm1082, 1, 0
        %v1099 = vsel %vm1083, 1, 0
        %v1100 = vsel %vm1084, 1, 0
        %v1101 = vsel %vm1085, 1, 0
        %v1102 = vsel %vm1086, 1, 0
        %v1103 = vsel %vm1087, 1, 0
        %v1104 = vsel %vm1088, 1, 0
        %v1105 = vsel %vm1089, 1, 0
        %v1106 = vsel %vm1090, 1, 0
        %v1107 = vsel %vm1091, 1, 0
        %v1108 = vsel %vm1092, 1, 0
        %v1109 = vsel %vm1093, 1, 0
        %v1110 = vsel %vm1094, 1, 0
        %v1111 = vsel %vm1095, 1, 0
        %vm1112 = vcmp.eq.s32.totalorder %v1096, 1
        %vm1113 = vcmp.eq.s32.totalorder %v1097, 1
        %vm1114 = vcmp.eq.s32.totalorder %v1098, 1
        %vm1115 = vcmp.eq.s32.totalorder %v1099, 1
        %vm1116 = vcmp.eq.s32.totalorder %v1100, 1
        %vm1117 = vcmp.eq.s32.totalorder %v1101, 1
        %vm1118 = vcmp.eq.s32.totalorder %v1102, 1
        %vm1119 = vcmp.eq.s32.totalorder %v1103, 1
        %vm1120 = vcmp.eq.s32.totalorder %v1104, 1
        %vm1121 = vcmp.eq.s32.totalorder %v1105, 1
        %vm1122 = vcmp.eq.s32.totalorder %v1106, 1
        %vm1123 = vcmp.eq.s32.totalorder %v1107, 1
        %vm1124 = vcmp.eq.s32.totalorder %v1108, 1
        %vm1125 = vcmp.eq.s32.totalorder %v1109, 1
        %vm1126 = vcmp.eq.s32.totalorder %v1110, 1
        %vm1127 = vcmp.eq.s32.totalorder %v1111, 1
        %v1128 = vsel %vm1112, %v1027, 0.0
        %v1129 = vsel %vm1113, %v1028, 0.0
        %v1130 = vsel %vm1114, %v1029, 0.0
        %v1131 = vsel %vm1115, %v1030, 0.0
        %v1132 = vsel %vm1116, %v1031, 0.0
        %v1133 = vsel %vm1117, %v1032, 0.0
        %v1134 = vsel %vm1118, %v1033, 0.0
        %v1135 = vsel %vm1119, %v1034, 0.0
        %v1136 = vsel %vm1120, %v1035, 0.0
        %v1137 = vsel %vm1121, %v1036, 0.0
        %v1138 = vsel %vm1122, %v1037, 0.0
        %v1139 = vsel %vm1123, %v1038, 0.0
        %v1140 = vsel %vm1124, %v1039, 0.0
        %v1141 = vsel %vm1125, %v1040, 0.0
        %v1142 = vsel %vm1126, %v1041, 0.0
        %v1143 = vsel %vm1127, %v1042, 0.0
        %vm1144 = vcmask 64512
        %1145 = vst.msk [vmem:[%s366] sm:$0xff] %vm1144, %v1128
        %1146 = vst.msk [vmem:[%s366 + $0x8] sm:$0xff] %vm1144, %v1129
        %1147 = vst.msk [vmem:[%s366 + $0x10] sm:$0xff] %vm1144, %v1130
        %1148 = vst.msk [vmem:[%s366 + $0x18] sm:$0xff] %vm1144, %v1131
        %1149 = vst.msk [vmem:[%s366 + $0x20] sm:$0xff] %vm1144, %v1132
        %1150 = vst.msk [vmem:[%s366 + $0x28] sm:$0xff] %vm1144, %v1133
        %1151 = vst.msk [vmem:[%s366 + $0x30] sm:$0xff] %vm1144, %v1134
        %1152 = vst.msk [vmem:[%s366 + $0x38] sm:$0xff] %vm1144, %v1135
        %1153 = vst.msk [vmem:[%s366 + $0x40] sm:$0xff] %vm1144, %v1136
        %1154 = vst.msk [vmem:[%s366 + $0x48] sm:$0xff] %vm1144, %v1137
        %1155 = vst.msk [vmem:[%s366 + $0x50] sm:$0xff] %vm1144, %v1138
        %1156 = vst.msk [vmem:[%s366 + $0x58] sm:$0xff] %vm1144, %v1139
        %1157 = vst.msk [vmem:[%s366 + $0x60] sm:$0xff] %vm1144, %v1140
        %1158 = vst.msk [vmem:[%s366 + $0x68] sm:$0xff] %vm1144, %v1141
        %1159 = vst.msk [vmem:[%s366 + $0x70] sm:$0xff] %vm1144, %v1142
        %1160 = vst.msk [vmem:[%s366 + $0x78] sm:$0xff] %vm1144, %v1143
        %v1161 = vld [vmem:[%s413] sm:$0x1]
        %v1162 = vperm.slane %v1161, 0
        %vm1163 = vcmp.eq.s32.totalorder %v1047, %v1162
        %v1164 = vsel %vm1163, 1, 0
        %v1165 = vcvt.s32.f32 %v1164
        %v1166 = vpack.c.bf16 %v1165, %v1165
        %v1167 = vpack.c.bf16 %v1129, %v1128
        %v1168 = vpack.c.bf16 %v1131, %v1130
        %v1169 = vpack.c.bf16 %v1133, %v1132
        %v1170 = vpack.c.bf16 %v1135, %v1134
        %v1171 = vpack.c.bf16 %v1137, %v1136
        %v1172 = vpack.c.bf16 %v1139, %v1138
        %v1173 = vpack.c.bf16 %v1141, %v1140
        %v1174 = vpack.c.bf16 %v1143, %v1142
        %1175 = vmatpush.bf16.msra.mxu0 %v1174
        %1176 = vmatpush.bf16.msra.mxu0 %v1173
        %1177 = vmatpush.bf16.msra.mxu0 %v1172
        %1178 = vmatpush.bf16.msra.mxu0 %v1171
        %1179 = vmatpush.bf16.msra.mxu0 %v1170
        %1180 = vmatpush.bf16.msra.mxu0 %v1169
        %1181 = vmatpush.bf16.msra.mxu0 %v1168
        %1182 = vmatpush.bf16.msra.mxu0 %v1167
        %1183 = vmatmul.bf16.gmra.mxu0 %v1166
        %v1184 = vpop.f32.mrf.mxu0
        %v1185 = vadd.f32 0.0, %v1184
        %v1186 = vpop.f32.mrf.mxu0
        %1187 = vdwg.mxu0
        %p1188 = scmp.eq.s32.totalorder %s24, 0
        // Predicated region
        $region45: #{tpu_custom_call.1} parent=43 // pred_check
          %p1189 = pneg %p1188
        $region46: #{tpu_custom_call.1} parent=43 // pred_check_branch
          %1191 = sbr.rel (%p1189) target = $region48
        $region47: #{tpu_custom_call.1} parent=43 // pred_region
          %vm1192 = vcmask 61440
          %1193 = vst.msk [vmem:[%s426] sm:$0x1f] %vm1192, 0.0
        $region48: #{tpu_custom_call.1} parent=43 // pred_fallthru
          _
        %v1194 = vld [vmem:[%s426] sm:$0x1f]
        %v1195 = vadd.f32 %v1194, %v1185
        %vm1196 = vcmask 61440
        %1197 = vst.msk [vmem:[%s426] sm:$0x1f] %vm1196, %v1195
        %s1198 = sand.u32 %s196, 1
        %s1199 = sand.u32 %s196, 1
        %s1200 = smul.addr %s1199, 128
        %s1201 = scalar_lea.vmem [#allocation2], %s1200
        %p1202 = scmp.lt.s32.totalorder %s23, 0
        %s1203 = scalar_select %p1202, %s23, 0
        %s1204 = smul.addr %s1203, 8
        %s1205 = scalar_lea.vmem %s7, %s1204
        // Predicated region
        $region49: #{tpu_custom_call.1} parent=43 // pred_check
          %p1206 = pneg %p206
        $region50: #{tpu_custom_call.1} parent=43 // pred_check_branch
          %1208 = sbr.rel (%p1206) target = $region52
        $region51: #{tpu_custom_call.1} parent=43 // pred_region
          %s1209 = smul.u32 %s23, 3
          %s1210 = sadd.s32 %s1209, %s24
          %s1211 = smul.u32 16, %s1210
          %s1212 = ssub.s32 38, %s1211
          %p1213 = scmp.lt.s32.totalorder %s1212, 16
          %s1214 = scalar_select %p1213, %s1212, 16
          %s1215 = smul.u32 8, %s1214
          %p1216 = scmp.ne.s32.totalorder 0, %s1215
          %s1217 = smul.addr %s1211, 8
          %s1218 = scalar_lea.vmem %s6, %s1217
          // Predicated region
          $region53: #{tpu_custom_call.1} parent=51 // pred_check
            %p1219 = pneg %p1216
          $region54: #{tpu_custom_call.1} parent=51 // pred_check_branch
            %1221 = sbr.rel (%p1219) target = $region56
          $region55: #{tpu_custom_call.1} parent=51 // pred_region
            // Predicated region
            $region57: #{tpu_custom_call.1} parent=55 // pred_check
              _
            $region58: #{tpu_custom_call.1} parent=55 // pred_check_branch
              %1223 = sbr.rel (0) target = $region60
            $region59: #{tpu_custom_call.1} parent=55 // pred_region
              // Predicated region
              $region79: #{tpu_custom_call.1} parent=59 // pred_check
                _
              $region80: #{tpu_custom_call.1} parent=59 // pred_check_branch
                %1303 = sbr.rel (0) target = $region82
              $region81: #{tpu_custom_call.1} parent=59 // pred_region
                %s1304 = sshrl.u32 %s1214, 4
                // While loop
                $region83: #{tpu_custom_call.1} parent=81 // loop_pre_header
                  _
                $region84: #{tpu_custom_call.1} parent=81 // loop_header
                  %s1306 = sphi 0, %s1308
                  %p1307 = scmp.ge.s32.totalorder %s1306, %s1304
                  %s1311 = sphi 0, %s1348
                  %s1312 = sphi %s1201, %s1351
                  %s1313 = sphi %s1218, %s1352
                $region85: #{tpu_custom_call.1} parent=81 // loop_header_branch
                  %1310 = sbr.rel (%p1307) target = $region89
                $region86: #{tpu_custom_call.1} parent=81 // loop_body
                  %v1314 = vld [vmem:[%s1312] sm:$0xff]
                  %1315 = vst [vmem:[%s1313] sm:$0xff] %v1314
                  %v1316 = vld [vmem:[%s1312 + $0x8] sm:$0xff]
                  %1317 = vst [vmem:[%s1313 + $0x8] sm:$0xff] %v1316
                  %v1318 = vld [vmem:[%s1312 + $0x10] sm:$0xff]
                  %1319 = vst [vmem:[%s1313 + $0x10] sm:$0xff] %v1318
                  %v1320 = vld [vmem:[%s1312 + $0x18] sm:$0xff]
                  %1321 = vst [vmem:[%s1313 + $0x18] sm:$0xff] %v1320
                  %v1322 = vld [vmem:[%s1312 + $0x20] sm:$0xff]
                  %1323 = vst [vmem:[%s1313 + $0x20] sm:$0xff] %v1322
                  %v1324 = vld [vmem:[%s1312 + $0x28] sm:$0xff]
                  %1325 = vst [vmem:[%s1313 + $0x28] sm:$0xff] %v1324
                  %v1326 = vld [vmem:[%s1312 + $0x30] sm:$0xff]
                  %1327 = vst [vmem:[%s1313 + $0x30] sm:$0xff] %v1326
                  %v1328 = vld [vmem:[%s1312 + $0x38] sm:$0xff]
                  %1329 = vst [vmem:[%s1313 + $0x38] sm:$0xff] %v1328
                  %v1330 = vld [vmem:[%s1312 + $0x40] sm:$0xff]
                  %1331 = vst [vmem:[%s1313 + $0x40] sm:$0xff] %v1330
                  %v1332 = vld [vmem:[%s1312 + $0x48] sm:$0xff]
                  %1333 = vst [vmem:[%s1313 + $0x48] sm:$0xff] %v1332
                  %v1334 = vld [vmem:[%s1312 + $0x50] sm:$0xff]
                  %1335 = vst [vmem:[%s1313 + $0x50] sm:$0xff] %v1334
                  %v1336 = vld [vmem:[%s1312 + $0x58] sm:$0xff]
                  %1337 = vst [vmem:[%s1313 + $0x58] sm:$0xff] %v1336
                  %v1338 = vld [vmem:[%s1312 + $0x60] sm:$0xff]
                  %1339 = vst [vmem:[%s1313 + $0x60] sm:$0xff] %v1338
                  %v1340 = vld [vmem:[%s1312 + $0x68] sm:$0xff]
                  %1341 = vst [vmem:[%s1313 + $0x68] sm:$0xff] %v1340
                  %v1342 = vld [vmem:[%s1312 + $0x70] sm:$0xff]
                  %1343 = vst [vmem:[%s1313 + $0x70] sm:$0xff] %v1342
                  %v1344 = vld [vmem:[%s1312 + $0x78] sm:$0xff]
                  %1345 = vst [vmem:[%s1313 + $0x78] sm:$0xff] %v1344
                  %s1346 = sadd.s32 1, %s1311
                  %p1347 = scmp.ge.s32.totalorder %s1346, %s1304
                  %s1348 = scalar_select %p1347, 0, %s1346
                  %s1349 = smul.u32 %s1348, 128
                  %s1350 = smul.u32 %s1348, 128
                  %s1351 = scalar_lea.vmem %s1201, %s1349 [#allocation2]
                  %s1352 = scalar_lea.vmem %s1218, %s1350
                $region87: #{tpu_custom_call.1} parent=81 // loop_footer
                  %s1308 = sadd.s32 %s1306, 1
                $region88: #{tpu_custom_call.1} parent=81 // loop_footer_branch
                  %1305 = sbr.rel target = $region84
                $region89: #{tpu_custom_call.1} parent=81 // loop_exit
                  _
                %s1353 = sshrl.u32 %s1214, 4
                %s1354 = sand.u32 %s1214, 15
                %s1355 = smul.u32 %s1353, 16
                %s1356 = smul.u32 8, %s1355
                %s1357 = scalar_lea.vmem %s1201, %s1356 [#allocation2]
                %s1358 = smul.u32 8, %s1355
                %s1359 = scalar_lea.vmem %s1218, %s1358
                // While loop
                $region90: #{tpu_custom_call.1} parent=81 // loop_pre_header
                  _
                $region91: #{tpu_custom_call.1} parent=81 // loop_header
                  %s1361 = sphi 0, %s1363
                  %p1362 = scmp.ge.s32.totalorder %s1361, %s1354
                  %s1366 = sphi 0, %s1373
                  %s1367 = sphi %s1357, %s1376
                  %s1368 = sphi %s1359, %s1377
                $region92: #{tpu_custom_call.1} parent=81 // loop_header_branch
                  %1365 = sbr.rel (%p1362) target = $region96
                $region93: #{tpu_custom_call.1} parent=81 // loop_body
                  %v1369 = vld [vmem:[%s1367] sm:$0xff]
                  %1370 = vst [vmem:[%s1368] sm:$0xff] %v1369
                  %s1371 = sadd.s32 1, %s1366
                  %p1372 = scmp.ge.s32.totalorder %s1371, %s1354
                  %s1373 = scalar_select %p1372, 0, %s1371
                  %s1374 = smul.u32 %s1373, 8
                  %s1375 = smul.u32 %s1373, 8
                  %s1376 = scalar_lea.vmem %s1357, %s1374 [#allocation2]
                  %s1377 = scalar_lea.vmem %s1359, %s1375
                $region94: #{tpu_custom_call.1} parent=81 // loop_footer
                  %s1363 = sadd.s32 %s1361, 1
                $region95: #{tpu_custom_call.1} parent=81 // loop_footer_branch
                  %1360 = sbr.rel target = $region91
                $region96: #{tpu_custom_call.1} parent=81 // loop_exit
                  _
              $region82: #{tpu_custom_call.1} parent=59 // pred_fallthru
                _
              // Predicated region
              $region97: #{tpu_custom_call.1} parent=59 // pred_check
                _
              $region98: #{tpu_custom_call.1} parent=59 // pred_check_branch
                %1379 = sbr.rel target = $region100
              $region99: #{tpu_custom_call.1} parent=59 // pred_region
                _
              $region100: #{tpu_custom_call.1} parent=59 // pred_fallthru
                _
            $region60: #{tpu_custom_call.1} parent=55 // pred_fallthru
              _
            // Predicated region
            $region61: #{tpu_custom_call.1} parent=55 // pred_check
              _
            $region62: #{tpu_custom_call.1} parent=55 // pred_check_branch
              %1225 = sbr.rel target = $region64
            $region63: #{tpu_custom_call.1} parent=55 // pred_region
              %s1227 = ssub.s32 256, 1
              %s1228 = sshrl.u32 %s1214, 4
              // While loop
              $region65: #{tpu_custom_call.1} parent=63 // loop_pre_header
                _
              $region66: #{tpu_custom_call.1} parent=63 // loop_header
                %s1230 = sphi 0, %s1232
                %p1231 = scmp.ge.s32.totalorder %s1230, %s1228
                %s1235 = sphi 0, %s1272
                %s1236 = sphi %s1201, %s1275
                %s1237 = sphi %s1218, %s1276
              $region67: #{tpu_custom_call.1} parent=63 // loop_header_branch
                %1234 = sbr.rel (%p1231) target = $region71
              $region68: #{tpu_custom_call.1} parent=63 // loop_body
                %v1238 = vld [vmem:[%s1236] sm:%s1227]
                %1239 = vst [vmem:[%s1237] sm:%s1227] %v1238
                %v1240 = vld [vmem:[%s1236 + $0x8] sm:%s1227]
                %1241 = vst [vmem:[%s1237 + $0x8] sm:%s1227] %v1240
                %v1242 = vld [vmem:[%s1236 + $0x10] sm:%s1227]
                %1243 = vst [vmem:[%s1237 + $0x10] sm:%s1227] %v1242
                %v1244 = vld [vmem:[%s1236 + $0x18] sm:%s1227]
                %1245 = vst [vmem:[%s1237 + $0x18] sm:%s1227] %v1244
                %v1246 = vld [vmem:[%s1236 + $0x20] sm:%s1227]
                %1247 = vst [vmem:[%s1237 + $0x20] sm:%s1227] %v1246
                %v1248 = vld [vmem:[%s1236 + $0x28] sm:%s1227]
                %1249 = vst [vmem:[%s1237 + $0x28] sm:%s1227] %v1248
                %v1250 = vld [vmem:[%s1236 + $0x30] sm:%s1227]
                %1251 = vst [vmem:[%s1237 + $0x30] sm:%s1227] %v1250
                %v1252 = vld [vmem:[%s1236 + $0x38] sm:%s1227]
                %1253 = vst [vmem:[%s1237 + $0x38] sm:%s1227] %v1252
                %v1254 = vld [vmem:[%s1236 + $0x40] sm:%s1227]
                %1255 = vst [vmem:[%s1237 + $0x40] sm:%s1227] %v1254
                %v1256 = vld [vmem:[%s1236 + $0x48] sm:%s1227]
                %1257 = vst [vmem:[%s1237 + $0x48] sm:%s1227] %v1256
                %v1258 = vld [vmem:[%s1236 + $0x50] sm:%s1227]
                %1259 = vst [vmem:[%s1237 + $0x50] sm:%s1227] %v1258
                %v1260 = vld [vmem:[%s1236 + $0x58] sm:%s1227]
                %1261 = vst [vmem:[%s1237 + $0x58] sm:%s1227] %v1260
                %v1262 = vld [vmem:[%s1236 + $0x60] sm:%s1227]
                %1263 = vst [vmem:[%s1237 + $0x60] sm:%s1227] %v1262
                %v1264 = vld [vmem:[%s1236 + $0x68] sm:%s1227]
                %1265 = vst [vmem:[%s1237 + $0x68] sm:%s1227] %v1264
                %v1266 = vld [vmem:[%s1236 + $0x70] sm:%s1227]
                %1267 = vst [vmem:[%s1237 + $0x70] sm:%s1227] %v1266
                %v1268 = vld [vmem:[%s1236 + $0x78] sm:%s1227]
                %1269 = vst [vmem:[%s1237 + $0x78] sm:%s1227] %v1268
                %s1270 = sadd.s32 1, %s1235
                %p1271 = scmp.ge.s32.totalorder %s1270, %s1228
                %s1272 = scalar_select %p1271, 0, %s1270
                %s1273 = smul.u32 %s1272, 128
                %s1274 = smul.u32 %s1272, 128
                %s1275 = scalar_lea.vmem %s1201, %s1273 [#allocation2]
                %s1276 = scalar_lea.vmem %s1218, %s1274
              $region69: #{tpu_custom_call.1} parent=63 // loop_footer
                %s1232 = sadd.s32 %s1230, 1
              $region70: #{tpu_custom_call.1} parent=63 // loop_footer_branch
                %1229 = sbr.rel target = $region66
              $region71: #{tpu_custom_call.1} parent=63 // loop_exit
                _
              %s1277 = sshrl.u32 %s1214, 4
              %s1278 = sand.u32 %s1214, 15
              %s1279 = smul.u32 %s1277, 16
              %s1280 = smul.u32 8, %s1279
              %s1281 = scalar_lea.vmem %s1201, %s1280 [#allocation2]
              %s1282 = smul.u32 8, %s1279
              %s1283 = scalar_lea.vmem %s1218, %s1282
              // While loop
              $region72: #{tpu_custom_call.1} parent=63 // loop_pre_header
                _
              $region73: #{tpu_custom_call.1} parent=63 // loop_header
                %s1285 = sphi 0, %s1287
                %p1286 = scmp.ge.s32.totalorder %s1285, %s1278
                %s1290 = sphi 0, %s1297
                %s1291 = sphi %s1281, %s1300
                %s1292 = sphi %s1283, %s1301
              $region74: #{tpu_custom_call.1} parent=63 // loop_header_branch
                %1289 = sbr.rel (%p1286) target = $region78
              $region75: #{tpu_custom_call.1} parent=63 // loop_body
                %v1293 = vld [vmem:[%s1291] sm:%s1227]
                %1294 = vst [vmem:[%s1292] sm:%s1227] %v1293
                %s1295 = sadd.s32 1, %s1290
                %p1296 = scmp.ge.s32.totalorder %s1295, %s1278
                %s1297 = scalar_select %p1296, 0, %s1295
                %s1298 = smul.u32 %s1297, 8
                %s1299 = smul.u32 %s1297, 8
                %s1300 = scalar_lea.vmem %s1281, %s1298 [#allocation2]
                %s1301 = scalar_lea.vmem %s1283, %s1299
              $region76: #{tpu_custom_call.1} parent=63 // loop_footer
                %s1287 = sadd.s32 %s1285, 1
              $region77: #{tpu_custom_call.1} parent=63 // loop_footer_branch
                %1284 = sbr.rel target = $region73
              $region78: #{tpu_custom_call.1} parent=63 // loop_exit
                _
            $region64: #{tpu_custom_call.1} parent=55 // pred_fallthru
              _
          $region56: #{tpu_custom_call.1} parent=51 // pred_fallthru
            _
          %1380 = vnop
        $region52: #{tpu_custom_call.1} parent=43 // pred_fallthru
          _
        // Predicated region
        $region101: #{tpu_custom_call.1} parent=43 // pred_check
          %p1381 = pneg %p232
        $region102: #{tpu_custom_call.1} parent=43 // pred_check_branch
          %1383 = sbr.rel (%p1381) target = $region104
        $region103: #{tpu_custom_call.1} parent=43 // pred_region
          _
        $region104: #{tpu_custom_call.1} parent=43 // pred_fallthru
          _
        // Predicated region
        $region105: #{tpu_custom_call.1} parent=43 // pred_check
          %p1384 = pneg %p232
        $region106: #{tpu_custom_call.1} parent=43 // pred_check_branch
          %1386 = sbr.rel (%p1384) target = $region108
        $region107: #{tpu_custom_call.1} parent=43 // pred_region
          %p1387 = scmp.lt.s32.totalorder %s23, 0
          %s1388 = scalar_select %p1387, %s23, 0
          %s1389 = smul.addr %s1388, 8
          %s1390 = scalar_lea.vmem %s7, %s1389
        $region108: #{tpu_custom_call.1} parent=43 // pred_fallthru
          _
      $region44: #{tpu_custom_call.1} parent=5 // pred_fallthru
        _
      %p1391 = scmp.le.s32.totalorder 2, %s14
      // Predicated region
      $region109: #{tpu_custom_call.1} parent=5 // pred_check
        %p1392 = pneg %p1391
      $region110: #{tpu_custom_call.1} parent=5 // pred_check_branch
        %1394 = sbr.rel (%p1392) target = $region112
      $region111: #{tpu_custom_call.1} parent=5 // pred_region
        %s1395 = ssub.s32 %s14, 2
        // Predicated region
        $region113: #{tpu_custom_call.1} parent=111 // pred_check
          %p1396 = pneg %p212
        $region114: #{tpu_custom_call.1} parent=111 // pred_check_branch
          %1398 = sbr.rel (%p1396) target = $region116
        $region115: #{tpu_custom_call.1} parent=111 // pred_region
          %s1399 = sand.u32 %s197, 1
          %s1400 = sand.u32 %s197, 1
          %s1401 = smul.addr %s1400, 128
          %s1402 = scalar_lea.vmem [#allocation2], %s1401
        $region116: #{tpu_custom_call.1} parent=111 // pred_fallthru
          _
      $region112: #{tpu_custom_call.1} parent=5 // pred_fallthru
        _
    $region6: #{tpu_custom_call.1} parent=1 // loop_footer
      %s18 = sadd.s32 1, %s14
    $region7: #{tpu_custom_call.1} parent=1 // loop_footer_branch
      %13 = sbr.rel target = $region3
    $region8: #{tpu_custom_call.1} parent=1 // loop_exit
      _

</llo_original>
